<compile_context>
chip_gen: v7x
topology: tpu7x:2x2x1
jax: 0.10.0
libtpu: 0.0.40
codegen_flags: <defaults>
</compile_context>

<pallas_src>
import jax
import jax.numpy as jnp
import numpy as np
from jax.experimental import pallas as pl
from jax.experimental.pallas import tpu as pltpu

C_OUT = 6       # channel width of every conv output
C_PAD = 8       # sublane-padded channel width used inside the kernel
N_LAYERS = 9    # 3 StackedConv blocks x 3 SimpleConv each
K_TAPS = 9      # 3x3 kernel taps
LANE = 128      # lane width / required multiple for the flattened spatial dim


# ---------------------------------------------------------------------------
# Kernel factory (closes over static sizes: padded row width, lanes per step).
# ---------------------------------------------------------------------------
def _make_kernel(Wp, Ltot):
    def kernel(x_ref, w_ref, b_ref, mask_ref, o_ref):
        # Interior mask: 1 at interior pixels of each image slot, 0 on the
        # halo ring and on lane padding.  Broadcast to full sublane width ONCE
        # and reuse the value in all 9 layers.
        mask = jnp.broadcast_to(mask_ref[...], (C_PAD, Ltot))

        def conv_layer(act, layer):
            # im2col via lane rotations on the XLU.  For tap (ky, kx) we need
            # act[:, p + d] with d = (ky-1)*Wp + (kx-1); roll(act, -d) gives
            # exactly that at every interior pixel (wrap-around only touches
            # halo / pad lanes, zeroed by `* mask` below).
            slabs = []
            for ky in range(3):
                for kx in range(3):
                    d = (ky - 1) * Wp + (kx - 1)
                    shift = (-d) % Ltot
                    slabs.append(act if shift == 0
                                 else pltpu.roll(act, shift, 1))
            patch = jnp.concatenate(slabs, axis=0)               # (72, Ltot)
            out = jnp.dot(w_ref[layer], patch,
                          preferred_element_type=jnp.float32)    # (C_PAD, Ltot)
            # bias + ReLU, then re-zero halo/pad lanes so they stay valid
            # zero padding for the next layer's taps.
            return jnp.maximum(out + b_ref[layer], 0.0) * mask

        act = x_ref[0]                                           # (C_PAD, Ltot)

        # StackedConv(in_size): layers 0..2
        for l in range(3):
            act = conv_layer(act, l)

        # ResidualBlock(6): layers 3..5 (+ residual)
        res = act
        for l in range(3, 6):
            act = conv_layer(act, l)
        act = act + res

        # ResidualBlock(6): layers 6..8 (+ residual); single lane-dense store.
        res = act
        for l in range(6, 9):
            act = conv_layer(act, l)
        o_ref[0, :, :] = act + res

    return kernel


# ---------------------------------------------------------------------------
# Wrapper: NCHW <-> lane-dense packing, weight repacking, pallas_call.
# ---------------------------------------------------------------------------
def stacked_res_forward(x_nchw, weights, biases, images_per_step=None):
    """x_nchw: (N, Cin, H, W).  weights[i]: (6, cin_i, 3, 3).  biases[i]: (6,)."""
    N, Cin, H, W = x_nchw.shape
    assert Cin <= C_PAD, "input channels must fit the sublane-padded width"
    Hp, Wp = H + 2, W + 2
    L = Hp * Wp                                   # padded spatial size
    L_pad = ((L + LANE - 1) // LANE) * LANE       # lane-dense per-image slot

    # Images per grid step: amortize per-step overhead, but keep the grid
    # length >= 2 (and even) when the batch allows so the "parallel" axis can
    # split across v7x's two TensorCores.
    if images_per_step is None:
        steps = 2 if N >= 2 else 1
        B = -(-N // steps)
    else:
        B = max(1, int(images_per_step))
        steps = -(-N // B)
    N_pad = steps * B
    Ltot = B * L_pad

    # Input packing: channels -> sublanes (pad to 8), zero-halo'd spatial ->
    # lanes (padded to a multiple of 128), B images side by side on lanes.
    xp = jnp.zeros((N_pad, C_PAD, Hp, Wp), jnp.float32)
    xp = xp.at[:N, :Cin, 1:H + 1, 1:W + 1].set(x_nchw.astype(jnp.float32))
    x_flat = jnp.zeros((N_pad, C_PAD, L_pad), jnp.float32)
    x_flat = x_flat.at[:, :, :L].set(xp.reshape(N_pad, C_PAD, L))
    x_lanes = (x_flat.reshape(steps, B, C_PAD, L_pad)
               .transpose(0, 2, 1, 3)
               .reshape(steps, C_PAD, Ltot))

    # Weights: (layer, cout_pad=8, tap*8 + cin_pad) ; biases: (layer, 8, 1).
    w_list, b_list = [], []
    for w, b in zip(weights, biases):
        cout, cin, _, _ = w.shape
        wt = jnp.transpose(w, (0, 2, 3, 1)).reshape(cout, K_TAPS, cin)
        wf = jnp.zeros((C_PAD, K_TAPS, C_PAD), jnp.float32)
        wf = wf.at[:cout, :, :cin].set(wt.astype(jnp.float32))
        w_list.append(wf.reshape(C_PAD, K_TAPS * C_PAD))
        bf = jnp.zeros((C_PAD, 1), jnp.float32).at[:cout, 0].set(b.astype(jnp.float32))
        b_list.append(bf)
    w_all = jnp.stack(w_list)            # (9, 8, 72)
    b_all = jnp.stack(b_list)            # (9, 8, 1)

    # Interior mask per image slot: 1 inside HxW, 0 on halo ring and pad lanes.
    m = np.zeros((Hp, Wp), np.float32)
    m[1:H + 1, 1:W + 1] = 1.0
    m_img = np.zeros((L_pad,), np.float32)
    m_img[:L] = m.reshape(-1)
    mask = jnp.asarray(np.tile(m_img, B).reshape(1, Ltot))

    kernel = _make_kernel(Wp, Ltot)

    out_lanes = pl.pallas_call(
        kernel,
        out_shape=jax.ShapeDtypeStruct((steps, C_PAD, Ltot), jnp.float32),
        grid_spec=pltpu.PrefetchScalarGridSpec(
            num_scalar_prefetch=0,
            grid=(steps,),
            in_specs=[
                pl.BlockSpec((1, C_PAD, Ltot), lambda n: (n, 0, 0)),
                pl.BlockSpec((N_LAYERS, C_PAD, K_TAPS * C_PAD), lambda n: (0, 0, 0)),
                pl.BlockSpec((N_LAYERS, C_PAD, 1), lambda n: (0, 0, 0)),
                pl.BlockSpec((1, Ltot), lambda n: (0, 0)),
            ],
            out_specs=pl.BlockSpec((1, C_PAD, Ltot), lambda n: (n, 0, 0)),
        ),
        compiler_params=pltpu.CompilerParams(
            dimension_semantics=("parallel",)),
    )(x_lanes, w_all, b_all, mask)

    # Unpack: lanes -> per-image, drop channel / halo / lane padding -> NCHW.
    out = (out_lanes.reshape(steps, C_PAD, B, L_pad)
           .transpose(0, 2, 1, 3)
           .reshape(N_pad, C_PAD, L_pad))
    out = out[:N, :C_OUT, :L].reshape(N, C_OUT, Hp, Wp)
    return out[:, :, 1:H + 1, 1:W + 1]


# ---------------------------------------------------------------------------
# Pure-JAX reference (lax conv) for a correctness check.
# ---------------------------------------------------------------------------
def _ref_forward(x_nchw, weights, biases):
    def conv_relu(x, w, b):
        y = jax.lax.conv_general_dilated(
            x, w, window_strides=(1, 1), padding='SAME',
            dimension_numbers=('NCHW', 'OIHW', 'NCHW'))
        return jnp.maximum(y + b[None, :, None, None], 0.0)

    def stacked(x, base):
        for i in range(3):
            x = conv_relu(x, weights[base + i], biases[base + i])
        return x

    y = stacked(x_nchw, 0)
    y = stacked(y, 3) + y
    y = stacked(y, 6) + y
    return y


if __name__ == "__main__":
    key = jax.random.PRNGKey(0)
    batch, in_size, H, W = 2, 4, 16, 16

    # deterministic parameter init (PyTorch-like uniform(-1/sqrt(fan_in), ...))
    cins = [in_size] + [6] * (N_LAYERS - 1)
    weights, biases = [], []
    for cin in cins:
        key, kw, kb = jax.random.split(key, 3)
        bound = 1.0 / np.sqrt(cin * 9)
        weights.append(jax.random.uniform(kw, (6, cin, 3, 3), jnp.float32,
                                          minval=-bound, maxval=bound))
        biases.append(jax.random.uniform(kb, (6,), jnp.float32,
                                         minval=-bound, maxval=bound))

    key, kx = jax.random.split(key)
    x = jax.random.normal(kx, (batch, in_size, H, W), jnp.float32)

    out = jax.block_until_ready(stacked_res_forward(x, weights, biases))
    ref = jax.block_until_ready(_ref_forward(x, weights, biases))
    np.testing.assert_allclose(np.asarray(out), np.asarray(ref),
                               rtol=1e-4, atol=1e-4)

    print("KERNEL_OK")
</pallas_src>

<mosaic_0001>
module attributes {stable_mosaic.version = 11 : i64} {
  func.func @kernel(%arg0: i32, %arg1: memref<1x8x384xf32, #tpu.memory_space<vmem>>, %arg2: memref<9x8x72xf32, #tpu.memory_space<vmem>>, %arg3: memref<9x8x1xf32, #tpu.memory_space<vmem>>, %arg4: memref<1x384xf32, #tpu.memory_space<vmem>>, %arg5: memref<1x8x384xf32, #tpu.memory_space<vmem>>) attributes {dimension_semantics = [#tpu.dimension_semantics<parallel>], iteration_bounds = array<i64: 2>, scalar_prefetch = 0 : i64, scratch_operands = 0 : i64, tpu.core_type = #tpu.core_type<tc>, window_params = [{transform_indices = @transform_0, window_bounds = array<i64: 1, 8, 384>}, {pipeline_mode = #tpu.pipeline_mode<synchronous>, transform_indices = @transform_1, window_bounds = array<i64: 9, 8, 72>}, {pipeline_mode = #tpu.pipeline_mode<synchronous>, transform_indices = @transform_2, window_bounds = array<i64: 9, 8, 1>}, {pipeline_mode = #tpu.pipeline_mode<synchronous>, transform_indices = @transform_3, window_bounds = array<i64: 1, 384>}, {transform_indices = @transform_4, window_bounds = array<i64: 1, 8, 384>}]} {
    %c0 = arith.constant 0 : index
    %c0_0 = arith.constant 0 : index
    %0 = vector.load %arg4[%c0, %c0_0] : memref<1x384xf32, #tpu.memory_space<vmem>>, vector<1x384xf32>
    %1 = vector.shape_cast %0 : vector<1x384xf32> to vector<1x384xf32>
    %2 = vector.broadcast %1 : vector<1x384xf32> to vector<8x384xf32>
    %c0_1 = arith.constant 0 : index
    %c0_2 = arith.constant 0 : index
    %c0_3 = arith.constant 0 : index
    %3 = vector.load %arg1[%c0_1, %c0_2, %c0_3] : memref<1x8x384xf32, #tpu.memory_space<vmem>>, vector<1x8x384xf32>
    %4 = vector.shape_cast %3 : vector<1x8x384xf32> to vector<8x384xf32>
    %c19_i32 = arith.constant 19 : i32
    %5 = tpu.dynamic_rotate %4 by %c19_i32 dim 1 : vector<8x384xf32>, i32 -> vector<8x384xf32>
    %c18_i32 = arith.constant 18 : i32
    %6 = tpu.dynamic_rotate %4 by %c18_i32 dim 1 : vector<8x384xf32>, i32 -> vector<8x384xf32>
    %c17_i32 = arith.constant 17 : i32
    %7 = tpu.dynamic_rotate %4 by %c17_i32 dim 1 : vector<8x384xf32>, i32 -> vector<8x384xf32>
    %c1_i32 = arith.constant 1 : i32
    %8 = tpu.dynamic_rotate %4 by %c1_i32 dim 1 : vector<8x384xf32>, i32 -> vector<8x384xf32>
    %c383_i32 = arith.constant 383 : i32
    %9 = tpu.dynamic_rotate %4 by %c383_i32 dim 1 : vector<8x384xf32>, i32 -> vector<8x384xf32>
    %c367_i32 = arith.constant 367 : i32
    %10 = tpu.dynamic_rotate %4 by %c367_i32 dim 1 : vector<8x384xf32>, i32 -> vector<8x384xf32>
    %c366_i32 = arith.constant 366 : i32
    %11 = tpu.dynamic_rotate %4 by %c366_i32 dim 1 : vector<8x384xf32>, i32 -> vector<8x384xf32>
    %c365_i32 = arith.constant 365 : i32
    %12 = tpu.dynamic_rotate %4 by %c365_i32 dim 1 : vector<8x384xf32>, i32 -> vector<8x384xf32>
    %13 = tpu.concatenate %5, %6, %7, %8, %4, %9, %10, %11, %12 in 0 : vector<8x384xf32>, vector<8x384xf32>, vector<8x384xf32>, vector<8x384xf32>, vector<8x384xf32>, vector<8x384xf32>, vector<8x384xf32>, vector<8x384xf32>, vector<8x384xf32> -> vector<72x384xf32>
    %c0_4 = arith.constant 0 : index
    %c0_5 = arith.constant 0 : index
    %c0_6 = arith.constant 0 : index
    %14 = vector.load %arg2[%c0_4, %c0_5, %c0_6] : memref<9x8x72xf32, #tpu.memory_space<vmem>>, vector<1x8x72xf32>
    %15 = vector.shape_cast %14 : vector<1x8x72xf32> to vector<8x72xf32>
    %cst = arith.constant dense<0.000000e+00> : vector<8x384xf32>
    %16 = tpu.matmul %15, %13, %cst {dimension_numbers = #tpu.dot_dimension_numbers<[1], [0], [0], [1], [0, 0, 1, 1], [], []>} : vector<8x72xf32>, vector<72x384xf32>, vector<8x384xf32> -> vector<8x384xf32>
    %c0_7 = arith.constant 0 : index
    %c0_8 = arith.constant 0 : index
    %c0_9 = arith.constant 0 : index
    %17 = vector.load %arg3[%c0_7, %c0_8, %c0_9] : memref<9x8x1xf32, #tpu.memory_space<vmem>>, vector<1x8x1xf32>
    %18 = vector.shape_cast %17 : vector<1x8x1xf32> to vector<8x1xf32>
    %19 = vector.broadcast %18 : vector<8x1xf32> to vector<8x384xf32>
    %20 = arith.addf %16, %19 : vector<8x384xf32>
    %cst_10 = arith.constant 0.000000e+00 : f32
    %21 = vector.broadcast %cst_10 : f32 to vector<8x384xf32>
    %22 = arith.maximumf %20, %21 : vector<8x384xf32>
    %23 = arith.mulf %22, %2 : vector<8x384xf32>
    %c19_i32_11 = arith.constant 19 : i32
    %24 = tpu.dynamic_rotate %23 by %c19_i32_11 dim 1 : vector<8x384xf32>, i32 -> vector<8x384xf32>
    %c18_i32_12 = arith.constant 18 : i32
    %25 = tpu.dynamic_rotate %23 by %c18_i32_12 dim 1 : vector<8x384xf32>, i32 -> vector<8x384xf32>
    %c17_i32_13 = arith.constant 17 : i32
    %26 = tpu.dynamic_rotate %23 by %c17_i32_13 dim 1 : vector<8x384xf32>, i32 -> vector<8x384xf32>
    %c1_i32_14 = arith.constant 1 : i32
    %27 = tpu.dynamic_rotate %23 by %c1_i32_14 dim 1 : vector<8x384xf32>, i32 -> vector<8x384xf32>
    %c383_i32_15 = arith.constant 383 : i32
    %28 = tpu.dynamic_rotate %23 by %c383_i32_15 dim 1 : vector<8x384xf32>, i32 -> vector<8x384xf32>
    %c367_i32_16 = arith.constant 367 : i32
    %29 = tpu.dynamic_rotate %23 by %c367_i32_16 dim 1 : vector<8x384xf32>, i32 -> vector<8x384xf32>
    %c366_i32_17 = arith.constant 366 : i32
    %30 = tpu.dynamic_rotate %23 by %c366_i32_17 dim 1 : vector<8x384xf32>, i32 -> vector<8x384xf32>
    %c365_i32_18 = arith.constant 365 : i32
    %31 = tpu.dynamic_rotate %23 by %c365_i32_18 dim 1 : vector<8x384xf32>, i32 -> vector<8x384xf32>
    %32 = tpu.concatenate %24, %25, %26, %27, %23, %28, %29, %30, %31 in 0 : vector<8x384xf32>, vector<8x384xf32>, vector<8x384xf32>, vector<8x384xf32>, vector<8x384xf32>, vector<8x384xf32>, vector<8x384xf32>, vector<8x384xf32>, vector<8x384xf32> -> vector<72x384xf32>
    %c1 = arith.constant 1 : index
    %c0_19 = arith.constant 0 : index
    %c0_20 = arith.constant 0 : index
    %33 = vector.load %arg2[%c1, %c0_19, %c0_20] : memref<9x8x72xf32, #tpu.memory_space<vmem>>, vector<1x8x72xf32>
    %34 = vector.shape_cast %33 : vector<1x8x72xf32> to vector<8x72xf32>
    %cst_21 = arith.constant dense<0.000000e+00> : vector<8x384xf32>
    %35 = tpu.matmul %34, %32, %cst_21 {dimension_numbers = #tpu.dot_dimension_numbers<[1], [0], [0], [1], [0, 0, 1, 1], [], []>} : vector<8x72xf32>, vector<72x384xf32>, vector<8x384xf32> -> vector<8x384xf32>
    %c1_22 = arith.constant 1 : index
    %c0_23 = arith.constant 0 : index
    %c0_24 = arith.constant 0 : index
    %36 = vector.load %arg3[%c1_22, %c0_23, %c0_24] : memref<9x8x1xf32, #tpu.memory_space<vmem>>, vector<1x8x1xf32>
    %37 = vector.shape_cast %36 : vector<1x8x1xf32> to vector<8x1xf32>
    %38 = vector.broadcast %37 : vector<8x1xf32> to vector<8x384xf32>
    %39 = arith.addf %35, %38 : vector<8x384xf32>
    %cst_25 = arith.constant 0.000000e+00 : f32
    %40 = vector.broadcast %cst_25 : f32 to vector<8x384xf32>
    %41 = arith.maximumf %39, %40 : vector<8x384xf32>
    %42 = arith.mulf %41, %2 : vector<8x384xf32>
    %c19_i32_26 = arith.constant 19 : i32
    %43 = tpu.dynamic_rotate %42 by %c19_i32_26 dim 1 : vector<8x384xf32>, i32 -> vector<8x384xf32>
    %c18_i32_27 = arith.constant 18 : i32
    %44 = tpu.dynamic_rotate %42 by %c18_i32_27 dim 1 : vector<8x384xf32>, i32 -> vector<8x384xf32>
    %c17_i32_28 = arith.constant 17 : i32
    %45 = tpu.dynamic_rotate %42 by %c17_i32_28 dim 1 : vector<8x384xf32>, i32 -> vector<8x384xf32>
    %c1_i32_29 = arith.constant 1 : i32
    %46 = tpu.dynamic_rotate %42 by %c1_i32_29 dim 1 : vector<8x384xf32>, i32 -> vector<8x384xf32>
    %c383_i32_30 = arith.constant 383 : i32
    %47 = tpu.dynamic_rotate %42 by %c383_i32_30 dim 1 : vector<8x384xf32>, i32 -> vector<8x384xf32>
    %c367_i32_31 = arith.constant 367 : i32
    %48 = tpu.dynamic_rotate %42 by %c367_i32_31 dim 1 : vector<8x384xf32>, i32 -> vector<8x384xf32>
    %c366_i32_32 = arith.constant 366 : i32
    %49 = tpu.dynamic_rotate %42 by %c366_i32_32 dim 1 : vector<8x384xf32>, i32 -> vector<8x384xf32>
    %c365_i32_33 = arith.constant 365 : i32
    %50 = tpu.dynamic_rotate %42 by %c365_i32_33 dim 1 : vector<8x384xf32>, i32 -> vector<8x384xf32>
    %51 = tpu.concatenate %43, %44, %45, %46, %42, %47, %48, %49, %50 in 0 : vector<8x384xf32>, vector<8x384xf32>, vector<8x384xf32>, vector<8x384xf32>, vector<8x384xf32>, vector<8x384xf32>, vector<8x384xf32>, vector<8x384xf32>, vector<8x384xf32> -> vector<72x384xf32>
    %c2 = arith.constant 2 : index
    %c0_34 = arith.constant 0 : index
    %c0_35 = arith.constant 0 : index
    %52 = vector.load %arg2[%c2, %c0_34, %c0_35] : memref<9x8x72xf32, #tpu.memory_space<vmem>>, vector<1x8x72xf32>
    %53 = vector.shape_cast %52 : vector<1x8x72xf32> to vector<8x72xf32>
    %cst_36 = arith.constant dense<0.000000e+00> : vector<8x384xf32>
    %54 = tpu.matmul %53, %51, %cst_36 {dimension_numbers = #tpu.dot_dimension_numbers<[1], [0], [0], [1], [0, 0, 1, 1], [], []>} : vector<8x72xf32>, vector<72x384xf32>, vector<8x384xf32> -> vector<8x384xf32>
    %c2_37 = arith.constant 2 : index
    %c0_38 = arith.constant 0 : index
    %c0_39 = arith.constant 0 : index
    %55 = vector.load %arg3[%c2_37, %c0_38, %c0_39] : memref<9x8x1xf32, #tpu.memory_space<vmem>>, vector<1x8x1xf32>
    %56 = vector.shape_cast %55 : vector<1x8x1xf32> to vector<8x1xf32>
    %57 = vector.broadcast %56 : vector<8x1xf32> to vector<8x384xf32>
    %58 = arith.addf %54, %57 : vector<8x384xf32>
    %cst_40 = arith.constant 0.000000e+00 : f32
    %59 = vector.broadcast %cst_40 : f32 to vector<8x384xf32>
    %60 = arith.maximumf %58, %59 : vector<8x384xf32>
    %61 = arith.mulf %60, %2 : vector<8x384xf32>
    %c19_i32_41 = arith.constant 19 : i32
    %62 = tpu.dynamic_rotate %61 by %c19_i32_41 dim 1 : vector<8x384xf32>, i32 -> vector<8x384xf32>
    %c18_i32_42 = arith.constant 18 : i32
    %63 = tpu.dynamic_rotate %61 by %c18_i32_42 dim 1 : vector<8x384xf32>, i32 -> vector<8x384xf32>
    %c17_i32_43 = arith.constant 17 : i32
    %64 = tpu.dynamic_rotate %61 by %c17_i32_43 dim 1 : vector<8x384xf32>, i32 -> vector<8x384xf32>
    %c1_i32_44 = arith.constant 1 : i32
    %65 = tpu.dynamic_rotate %61 by %c1_i32_44 dim 1 : vector<8x384xf32>, i32 -> vector<8x384xf32>
    %c383_i32_45 = arith.constant 383 : i32
    %66 = tpu.dynamic_rotate %61 by %c383_i32_45 dim 1 : vector<8x384xf32>, i32 -> vector<8x384xf32>
    %c367_i32_46 = arith.constant 367 : i32
    %67 = tpu.dynamic_rotate %61 by %c367_i32_46 dim 1 : vector<8x384xf32>, i32 -> vector<8x384xf32>
    %c366_i32_47 = arith.constant 366 : i32
    %68 = tpu.dynamic_rotate %61 by %c366_i32_47 dim 1 : vector<8x384xf32>, i32 -> vector<8x384xf32>
    %c365_i32_48 = arith.constant 365 : i32
    %69 = tpu.dynamic_rotate %61 by %c365_i32_48 dim 1 : vector<8x384xf32>, i32 -> vector<8x384xf32>
    %70 = tpu.concatenate %62, %63, %64, %65, %61, %66, %67, %68, %69 in 0 : vector<8x384xf32>, vector<8x384xf32>, vector<8x384xf32>, vector<8x384xf32>, vector<8x384xf32>, vector<8x384xf32>, vector<8x384xf32>, vector<8x384xf32>, vector<8x384xf32> -> vector<72x384xf32>
    %c3 = arith.constant 3 : index
    %c0_49 = arith.constant 0 : index
    %c0_50 = arith.constant 0 : index
    %71 = vector.load %arg2[%c3, %c0_49, %c0_50] : memref<9x8x72xf32, #tpu.memory_space<vmem>>, vector<1x8x72xf32>
    %72 = vector.shape_cast %71 : vector<1x8x72xf32> to vector<8x72xf32>
    %cst_51 = arith.constant dense<0.000000e+00> : vector<8x384xf32>
    %73 = tpu.matmul %72, %70, %cst_51 {dimension_numbers = #tpu.dot_dimension_numbers<[1], [0], [0], [1], [0, 0, 1, 1], [], []>} : vector<8x72xf32>, vector<72x384xf32>, vector<8x384xf32> -> vector<8x384xf32>
    %c3_52 = arith.constant 3 : index
    %c0_53 = arith.constant 0 : index
    %c0_54 = arith.constant 0 : index
    %74 = vector.load %arg3[%c3_52, %c0_53, %c0_54] : memref<9x8x1xf32, #tpu.memory_space<vmem>>, vector<1x8x1xf32>
    %75 = vector.shape_cast %74 : vector<1x8x1xf32> to vector<8x1xf32>
    %76 = vector.broadcast %75 : vector<8x1xf32> to vector<8x384xf32>
    %77 = arith.addf %73, %76 : vector<8x384xf32>
    %cst_55 = arith.constant 0.000000e+00 : f32
    %78 = vector.broadcast %cst_55 : f32 to vector<8x384xf32>
    %79 = arith.maximumf %77, %78 : vector<8x384xf32>
    %80 = arith.mulf %79, %2 : vector<8x384xf32>
    %c19_i32_56 = arith.constant 19 : i32
    %81 = tpu.dynamic_rotate %80 by %c19_i32_56 dim 1 : vector<8x384xf32>, i32 -> vector<8x384xf32>
    %c18_i32_57 = arith.constant 18 : i32
    %82 = tpu.dynamic_rotate %80 by %c18_i32_57 dim 1 : vector<8x384xf32>, i32 -> vector<8x384xf32>
    %c17_i32_58 = arith.constant 17 : i32
    %83 = tpu.dynamic_rotate %80 by %c17_i32_58 dim 1 : vector<8x384xf32>, i32 -> vector<8x384xf32>
    %c1_i32_59 = arith.constant 1 : i32
    %84 = tpu.dynamic_rotate %80 by %c1_i32_59 dim 1 : vector<8x384xf32>, i32 -> vector<8x384xf32>
    %c383_i32_60 = arith.constant 383 : i32
    %85 = tpu.dynamic_rotate %80 by %c383_i32_60 dim 1 : vector<8x384xf32>, i32 -> vector<8x384xf32>
    %c367_i32_61 = arith.constant 367 : i32
    %86 = tpu.dynamic_rotate %80 by %c367_i32_61 dim 1 : vector<8x384xf32>, i32 -> vector<8x384xf32>
    %c366_i32_62 = arith.constant 366 : i32
    %87 = tpu.dynamic_rotate %80 by %c366_i32_62 dim 1 : vector<8x384xf32>, i32 -> vector<8x384xf32>
    %c365_i32_63 = arith.constant 365 : i32
    %88 = tpu.dynamic_rotate %80 by %c365_i32_63 dim 1 : vector<8x384xf32>, i32 -> vector<8x384xf32>
    %89 = tpu.concatenate %81, %82, %83, %84, %80, %85, %86, %87, %88 in 0 : vector<8x384xf32>, vector<8x384xf32>, vector<8x384xf32>, vector<8x384xf32>, vector<8x384xf32>, vector<8x384xf32>, vector<8x384xf32>, vector<8x384xf32>, vector<8x384xf32> -> vector<72x384xf32>
    %c4 = arith.constant 4 : index
    %c0_64 = arith.constant 0 : index
    %c0_65 = arith.constant 0 : index
    %90 = vector.load %arg2[%c4, %c0_64, %c0_65] : memref<9x8x72xf32, #tpu.memory_space<vmem>>, vector<1x8x72xf32>
    %91 = vector.shape_cast %90 : vector<1x8x72xf32> to vector<8x72xf32>
    %cst_66 = arith.constant dense<0.000000e+00> : vector<8x384xf32>
    %92 = tpu.matmul %91, %89, %cst_66 {dimension_numbers = #tpu.dot_dimension_numbers<[1], [0], [0], [1], [0, 0, 1, 1], [], []>} : vector<8x72xf32>, vector<72x384xf32>, vector<8x384xf32> -> vector<8x384xf32>
    %c4_67 = arith.constant 4 : index
    %c0_68 = arith.constant 0 : index
    %c0_69 = arith.constant 0 : index
    %93 = vector.load %arg3[%c4_67, %c0_68, %c0_69] : memref<9x8x1xf32, #tpu.memory_space<vmem>>, vector<1x8x1xf32>
    %94 = vector.shape_cast %93 : vector<1x8x1xf32> to vector<8x1xf32>
    %95 = vector.broadcast %94 : vector<8x1xf32> to vector<8x384xf32>
    %96 = arith.addf %92, %95 : vector<8x384xf32>
    %cst_70 = arith.constant 0.000000e+00 : f32
    %97 = vector.broadcast %cst_70 : f32 to vector<8x384xf32>
    %98 = arith.maximumf %96, %97 : vector<8x384xf32>
    %99 = arith.mulf %98, %2 : vector<8x384xf32>
    %c19_i32_71 = arith.constant 19 : i32
    %100 = tpu.dynamic_rotate %99 by %c19_i32_71 dim 1 : vector<8x384xf32>, i32 -> vector<8x384xf32>
    %c18_i32_72 = arith.constant 18 : i32
    %101 = tpu.dynamic_rotate %99 by %c18_i32_72 dim 1 : vector<8x384xf32>, i32 -> vector<8x384xf32>
    %c17_i32_73 = arith.constant 17 : i32
    %102 = tpu.dynamic_rotate %99 by %c17_i32_73 dim 1 : vector<8x384xf32>, i32 -> vector<8x384xf32>
    %c1_i32_74 = arith.constant 1 : i32
    %103 = tpu.dynamic_rotate %99 by %c1_i32_74 dim 1 : vector<8x384xf32>, i32 -> vector<8x384xf32>
    %c383_i32_75 = arith.constant 383 : i32
    %104 = tpu.dynamic_rotate %99 by %c383_i32_75 dim 1 : vector<8x384xf32>, i32 -> vector<8x384xf32>
    %c367_i32_76 = arith.constant 367 : i32
    %105 = tpu.dynamic_rotate %99 by %c367_i32_76 dim 1 : vector<8x384xf32>, i32 -> vector<8x384xf32>
    %c366_i32_77 = arith.constant 366 : i32
    %106 = tpu.dynamic_rotate %99 by %c366_i32_77 dim 1 : vector<8x384xf32>, i32 -> vector<8x384xf32>
    %c365_i32_78 = arith.constant 365 : i32
    %107 = tpu.dynamic_rotate %99 by %c365_i32_78 dim 1 : vector<8x384xf32>, i32 -> vector<8x384xf32>
    %108 = tpu.concatenate %100, %101, %102, %103, %99, %104, %105, %106, %107 in 0 : vector<8x384xf32>, vector<8x384xf32>, vector<8x384xf32>, vector<8x384xf32>, vector<8x384xf32>, vector<8x384xf32>, vector<8x384xf32>, vector<8x384xf32>, vector<8x384xf32> -> vector<72x384xf32>
    %c5 = arith.constant 5 : index
    %c0_79 = arith.constant 0 : index
    %c0_80 = arith.constant 0 : index
    %109 = vector.load %arg2[%c5, %c0_79, %c0_80] : memref<9x8x72xf32, #tpu.memory_space<vmem>>, vector<1x8x72xf32>
    %110 = vector.shape_cast %109 : vector<1x8x72xf32> to vector<8x72xf32>
    %cst_81 = arith.constant dense<0.000000e+00> : vector<8x384xf32>
    %111 = tpu.matmul %110, %108, %cst_81 {dimension_numbers = #tpu.dot_dimension_numbers<[1], [0], [0], [1], [0, 0, 1, 1], [], []>} : vector<8x72xf32>, vector<72x384xf32>, vector<8x384xf32> -> vector<8x384xf32>
    %c5_82 = arith.constant 5 : index
    %c0_83 = arith.constant 0 : index
    %c0_84 = arith.constant 0 : index
    %112 = vector.load %arg3[%c5_82, %c0_83, %c0_84] : memref<9x8x1xf32, #tpu.memory_space<vmem>>, vector<1x8x1xf32>
    %113 = vector.shape_cast %112 : vector<1x8x1xf32> to vector<8x1xf32>
    %114 = vector.broadcast %113 : vector<8x1xf32> to vector<8x384xf32>
    %115 = arith.addf %111, %114 : vector<8x384xf32>
    %cst_85 = arith.constant 0.000000e+00 : f32
    %116 = vector.broadcast %cst_85 : f32 to vector<8x384xf32>
    %117 = arith.maximumf %115, %116 : vector<8x384xf32>
    %118 = arith.mulf %117, %2 : vector<8x384xf32>
    %119 = arith.addf %118, %61 : vector<8x384xf32>
    %c19_i32_86 = arith.constant 19 : i32
    %120 = tpu.dynamic_rotate %119 by %c19_i32_86 dim 1 : vector<8x384xf32>, i32 -> vector<8x384xf32>
    %c18_i32_87 = arith.constant 18 : i32
    %121 = tpu.dynamic_rotate %119 by %c18_i32_87 dim 1 : vector<8x384xf32>, i32 -> vector<8x384xf32>
    %c17_i32_88 = arith.constant 17 : i32
    %122 = tpu.dynamic_rotate %119 by %c17_i32_88 dim 1 : vector<8x384xf32>, i32 -> vector<8x384xf32>
    %c1_i32_89 = arith.constant 1 : i32
    %123 = tpu.dynamic_rotate %119 by %c1_i32_89 dim 1 : vector<8x384xf32>, i32 -> vector<8x384xf32>
    %c383_i32_90 = arith.constant 383 : i32
    %124 = tpu.dynamic_rotate %119 by %c383_i32_90 dim 1 : vector<8x384xf32>, i32 -> vector<8x384xf32>
    %c367_i32_91 = arith.constant 367 : i32
    %125 = tpu.dynamic_rotate %119 by %c367_i32_91 dim 1 : vector<8x384xf32>, i32 -> vector<8x384xf32>
    %c366_i32_92 = arith.constant 366 : i32
    %126 = tpu.dynamic_rotate %119 by %c366_i32_92 dim 1 : vector<8x384xf32>, i32 -> vector<8x384xf32>
    %c365_i32_93 = arith.constant 365 : i32
    %127 = tpu.dynamic_rotate %119 by %c365_i32_93 dim 1 : vector<8x384xf32>, i32 -> vector<8x384xf32>
    %128 = tpu.concatenate %120, %121, %122, %123, %119, %124, %125, %126, %127 in 0 : vector<8x384xf32>, vector<8x384xf32>, vector<8x384xf32>, vector<8x384xf32>, vector<8x384xf32>, vector<8x384xf32>, vector<8x384xf32>, vector<8x384xf32>, vector<8x384xf32> -> vector<72x384xf32>
    %c6 = arith.constant 6 : index
    %c0_94 = arith.constant 0 : index
    %c0_95 = arith.constant 0 : index
    %129 = vector.load %arg2[%c6, %c0_94, %c0_95] : memref<9x8x72xf32, #tpu.memory_space<vmem>>, vector<1x8x72xf32>
    %130 = vector.shape_cast %129 : vector<1x8x72xf32> to vector<8x72xf32>
    %cst_96 = arith.constant dense<0.000000e+00> : vector<8x384xf32>
    %131 = tpu.matmul %130, %128, %cst_96 {dimension_numbers = #tpu.dot_dimension_numbers<[1], [0], [0], [1], [0, 0, 1, 1], [], []>} : vector<8x72xf32>, vector<72x384xf32>, vector<8x384xf32> -> vector<8x384xf32>
    %c6_97 = arith.constant 6 : index
    %c0_98 = arith.constant 0 : index
    %c0_99 = arith.constant 0 : index
    %132 = vector.load %arg3[%c6_97, %c0_98, %c0_99] : memref<9x8x1xf32, #tpu.memory_space<vmem>>, vector<1x8x1xf32>
    %133 = vector.shape_cast %132 : vector<1x8x1xf32> to vector<8x1xf32>
    %134 = vector.broadcast %133 : vector<8x1xf32> to vector<8x384xf32>
    %135 = arith.addf %131, %134 : vector<8x384xf32>
    %cst_100 = arith.constant 0.000000e+00 : f32
    %136 = vector.broadcast %cst_100 : f32 to vector<8x384xf32>
    %137 = arith.maximumf %135, %136 : vector<8x384xf32>
    %138 = arith.mulf %137, %2 : vector<8x384xf32>
    %c19_i32_101 = arith.constant 19 : i32
    %139 = tpu.dynamic_rotate %138 by %c19_i32_101 dim 1 : vector<8x384xf32>, i32 -> vector<8x384xf32>
    %c18_i32_102 = arith.constant 18 : i32
    %140 = tpu.dynamic_rotate %138 by %c18_i32_102 dim 1 : vector<8x384xf32>, i32 -> vector<8x384xf32>
    %c17_i32_103 = arith.constant 17 : i32
    %141 = tpu.dynamic_rotate %138 by %c17_i32_103 dim 1 : vector<8x384xf32>, i32 -> vector<8x384xf32>
    %c1_i32_104 = arith.constant 1 : i32
    %142 = tpu.dynamic_rotate %138 by %c1_i32_104 dim 1 : vector<8x384xf32>, i32 -> vector<8x384xf32>
    %c383_i32_105 = arith.constant 383 : i32
    %143 = tpu.dynamic_rotate %138 by %c383_i32_105 dim 1 : vector<8x384xf32>, i32 -> vector<8x384xf32>
    %c367_i32_106 = arith.constant 367 : i32
    %144 = tpu.dynamic_rotate %138 by %c367_i32_106 dim 1 : vector<8x384xf32>, i32 -> vector<8x384xf32>
    %c366_i32_107 = arith.constant 366 : i32
    %145 = tpu.dynamic_rotate %138 by %c366_i32_107 dim 1 : vector<8x384xf32>, i32 -> vector<8x384xf32>
    %c365_i32_108 = arith.constant 365 : i32
    %146 = tpu.dynamic_rotate %138 by %c365_i32_108 dim 1 : vector<8x384xf32>, i32 -> vector<8x384xf32>
    %147 = tpu.concatenate %139, %140, %141, %142, %138, %143, %144, %145, %146 in 0 : vector<8x384xf32>, vector<8x384xf32>, vector<8x384xf32>, vector<8x384xf32>, vector<8x384xf32>, vector<8x384xf32>, vector<8x384xf32>, vector<8x384xf32>, vector<8x384xf32> -> vector<72x384xf32>
    %c7 = arith.constant 7 : index
    %c0_109 = arith.constant 0 : index
    %c0_110 = arith.constant 0 : index
    %148 = vector.load %arg2[%c7, %c0_109, %c0_110] : memref<9x8x72xf32, #tpu.memory_space<vmem>>, vector<1x8x72xf32>
    %149 = vector.shape_cast %148 : vector<1x8x72xf32> to vector<8x72xf32>
    %cst_111 = arith.constant dense<0.000000e+00> : vector<8x384xf32>
    %150 = tpu.matmul %149, %147, %cst_111 {dimension_numbers = #tpu.dot_dimension_numbers<[1], [0], [0], [1], [0, 0, 1, 1], [], []>} : vector<8x72xf32>, vector<72x384xf32>, vector<8x384xf32> -> vector<8x384xf32>
    %c7_112 = arith.constant 7 : index
    %c0_113 = arith.constant 0 : index
    %c0_114 = arith.constant 0 : index
    %151 = vector.load %arg3[%c7_112, %c0_113, %c0_114] : memref<9x8x1xf32, #tpu.memory_space<vmem>>, vector<1x8x1xf32>
    %152 = vector.shape_cast %151 : vector<1x8x1xf32> to vector<8x1xf32>
    %153 = vector.broadcast %152 : vector<8x1xf32> to vector<8x384xf32>
    %154 = arith.addf %150, %153 : vector<8x384xf32>
    %cst_115 = arith.constant 0.000000e+00 : f32
    %155 = vector.broadcast %cst_115 : f32 to vector<8x384xf32>
    %156 = arith.maximumf %154, %155 : vector<8x384xf32>
    %157 = arith.mulf %156, %2 : vector<8x384xf32>
    %c19_i32_116 = arith.constant 19 : i32
    %158 = tpu.dynamic_rotate %157 by %c19_i32_116 dim 1 : vector<8x384xf32>, i32 -> vector<8x384xf32>
    %c18_i32_117 = arith.constant 18 : i32
    %159 = tpu.dynamic_rotate %157 by %c18_i32_117 dim 1 : vector<8x384xf32>, i32 -> vector<8x384xf32>
    %c17_i32_118 = arith.constant 17 : i32
    %160 = tpu.dynamic_rotate %157 by %c17_i32_118 dim 1 : vector<8x384xf32>, i32 -> vector<8x384xf32>
    %c1_i32_119 = arith.constant 1 : i32
    %161 = tpu.dynamic_rotate %157 by %c1_i32_119 dim 1 : vector<8x384xf32>, i32 -> vector<8x384xf32>
    %c383_i32_120 = arith.constant 383 : i32
    %162 = tpu.dynamic_rotate %157 by %c383_i32_120 dim 1 : vector<8x384xf32>, i32 -> vector<8x384xf32>
    %c367_i32_121 = arith.constant 367 : i32
    %163 = tpu.dynamic_rotate %157 by %c367_i32_121 dim 1 : vector<8x384xf32>, i32 -> vector<8x384xf32>
    %c366_i32_122 = arith.constant 366 : i32
    %164 = tpu.dynamic_rotate %157 by %c366_i32_122 dim 1 : vector<8x384xf32>, i32 -> vector<8x384xf32>
    %c365_i32_123 = arith.constant 365 : i32
    %165 = tpu.dynamic_rotate %157 by %c365_i32_123 dim 1 : vector<8x384xf32>, i32 -> vector<8x384xf32>
    %166 = tpu.concatenate %158, %159, %160, %161, %157, %162, %163, %164, %165 in 0 : vector<8x384xf32>, vector<8x384xf32>, vector<8x384xf32>, vector<8x384xf32>, vector<8x384xf32>, vector<8x384xf32>, vector<8x384xf32>, vector<8x384xf32>, vector<8x384xf32> -> vector<72x384xf32>
    %c8 = arith.constant 8 : index
    %c0_124 = arith.constant 0 : index
    %c0_125 = arith.constant 0 : index
    %167 = vector.load %arg2[%c8, %c0_124, %c0_125] : memref<9x8x72xf32, #tpu.memory_space<vmem>>, vector<1x8x72xf32>
    %168 = vector.shape_cast %167 : vector<1x8x72xf32> to vector<8x72xf32>
    %cst_126 = arith.constant dense<0.000000e+00> : vector<8x384xf32>
    %169 = tpu.matmul %168, %166, %cst_126 {dimension_numbers = #tpu.dot_dimension_numbers<[1], [0], [0], [1], [0, 0, 1, 1], [], []>} : vector<8x72xf32>, vector<72x384xf32>, vector<8x384xf32> -> vector<8x384xf32>
    %c8_127 = arith.constant 8 : index
    %c0_128 = arith.constant 0 : index
    %c0_129 = arith.constant 0 : index
    %170 = vector.load %arg3[%c8_127, %c0_128, %c0_129] : memref<9x8x1xf32, #tpu.memory_space<vmem>>, vector<1x8x1xf32>
    %171 = vector.shape_cast %170 : vector<1x8x1xf32> to vector<8x1xf32>
    %172 = vector.broadcast %171 : vector<8x1xf32> to vector<8x384xf32>
    %173 = arith.addf %169, %172 : vector<8x384xf32>
    %cst_130 = arith.constant 0.000000e+00 : f32
    %174 = vector.broadcast %cst_130 : f32 to vector<8x384xf32>
    %175 = arith.maximumf %173, %174 : vector<8x384xf32>
    %176 = arith.mulf %175, %2 : vector<8x384xf32>
    %177 = arith.addf %176, %119 : vector<8x384xf32>
    %c0_131 = arith.constant 0 : index
    %c0_132 = arith.constant 0 : index
    %c0_133 = arith.constant 0 : index
    %178 = vector.load %arg5[%c0_131, %c0_132, %c0_133] : memref<1x8x384xf32, #tpu.memory_space<vmem>>, vector<1x8x384xf32>
    %179 = vector.shape_cast %178 : vector<1x8x384xf32> to vector<8x384xf32>
    %180 = vector.shape_cast %177 : vector<8x384xf32> to vector<1x8x384xf32>
    tpu.vector_store %arg5[%c0_131, %c0_132, %c0_133], %180 {strides = array<i32>} : memref<1x8x384xf32, #tpu.memory_space<vmem>>, vector<1x8x384xf32>,
    return
  }
  func.func @transform_0(%arg0: i32) -> (i32, i32, i32) {
    %c0_i32 = arith.constant 0 : i32
    %c0_i32_0 = arith.constant 0 : i32
    %c0_i32_1 = arith.constant 0 : i32
    return %arg0, %c0_i32, %c0_i32_0 : i32, i32, i32
  }
  func.func @transform_1(%arg0: i32) -> (i32, i32, i32) {
    %c0_i32 = arith.constant 0 : i32
    %c0_i32_0 = arith.constant 0 : i32
    %c0_i32_1 = arith.constant 0 : i32
    %c0_i32_2 = arith.constant 0 : i32
    return %c0_i32, %c0_i32_0, %c0_i32_1 : i32, i32, i32
  }
  func.func @transform_2(%arg0: i32) -> (i32, i32, i32) {
    %c0_i32 = arith.constant 0 : i32
    %c0_i32_0 = arith.constant 0 : i32
    %c0_i32_1 = arith.constant 0 : i32
    %c0_i32_2 = arith.constant 0 : i32
    return %c0_i32, %c0_i32_0, %c0_i32_1 : i32, i32, i32
  }
  func.func @transform_3(%arg0: i32) -> (i32, i32) {
    %c0_i32 = arith.constant 0 : i32
    %c0_i32_0 = arith.constant 0 : i32
    %c0_i32_1 = arith.constant 0 : i32
    return %c0_i32, %c0_i32_0 : i32, i32
  }
  func.func @transform_4(%arg0: i32) -> (i32, i32, i32) {
    %c0_i32 = arith.constant 0 : i32
    %c0_i32_0 = arith.constant 0 : i32
    %c0_i32_1 = arith.constant 0 : i32
    return %arg0, %c0_i32, %c0_i32_0 : i32, i32, i32
  }
}

</mosaic_0001>

<llo_original>
// kernel: tpu_custom_call.1
$region0: #{tpu_custom_call.1}
  #allocation0 [shape = 'u32[]', space=smem, size = 0x4, offset = 0x4, fixed_abs, tag = 'smem constant byte address 0x4 - core index']
  #allocation1 [shape = 'u32[144,128]{1,0:T(1,128)}', space=vmem, size = 0x12000, scoped, tag = 'internal scratch']
  %s0 = inlined_call_operand.hbm [shape: f32[2,8,384], index: 0, kind: input, shape index: {}]
  %s1 = inlined_call_operand.vmem [shape: f32[9,8,72], index: 1, kind: input, shape index: {}]
  %s2 = inlined_call_operand.vmem [shape: f32[9,8,1], index: 2, kind: input, shape index: {}]
  %s3 = inlined_call_operand.vmem [shape: f32[1,384], index: 3, kind: input, shape index: {}]
  %s4 = inlined_call_operand.hbm [shape: f32[2,8,384], index: 4, kind: output, shape index: {}]
  %s5 = sld [smem:[#allocation0]]
  $region53: #{tpu_custom_call.1} parent=0
    _
  %s7 = ssub.s32 1, %s5
  %s8 = scalar_select 0, %s7, %s5
  $region1: #{tpu_custom_call.1} parent=0
    #allocation2 [shape = 'u8[24576]{0}', space=vmem, size = 0x6000, scoped, tag = 'input window, operand 0']
    #allocation3 [shape = 's32[2]{0}', space=sflag, size = 0x8, scoped, tag = 'scoped memory for tpu_custom_call.1']
    #allocation4 [shape = 's32[2]{0}', space=sflag, size = 0x8, scoped, tag = 'scoped memory for tpu_custom_call.1']
    #allocation5 [shape = 'u8[24576]{0}', space=vmem, size = 0x6000, scoped, tag = 'output window, operand 0']
    %9 = vsyncpa [#allocation3], 0
    %s10 = scalar_lea.sflag [#allocation3], 1
    %11 = vsyncpa %s10, 0
    %12 = vsyncpa [#allocation4], 0
    %s13 = scalar_lea.sflag [#allocation4], 1
    %14 = vsyncpa %s13, 0
    loop: start=0, step=1, limit=4
    $region2: #{tpu_custom_call.1} parent=1 // loop_pre_header
      _
    $region3: #{tpu_custom_call.1} parent=1 // loop_header
      %s16 = sphi 0, %s20
      %p17 = scmp.ge.s32.totalorder %s16, 4
      %s26 = sphi 0, %s28
      %s29 = sphi 0, %s26
      %s30 = sphi 0, %s29
      %s46 = sphi 0, %s30
      %s50 = sphi 0, %s50
      %s52 = sphi 0, %s50
      %s53 = sphi 0, %s52
      %s67 = sphi 0, %s53
      %s71 = sphi 0, %s71
      %s73 = sphi 0, %s71
      %s74 = sphi 0, %s73
      %s88 = sphi 0, %s74
      %s92 = sphi 0, %s92
      %s94 = sphi 0, %s92
      %s95 = sphi 0, %s94
      %s109 = sphi 0, %s95
      %s115 = sphi 0, %s117
      %s118 = sphi 0, %s115
      %s119 = sphi 0, %s118
      %s135 = sphi 0, %s119
    $region4: #{tpu_custom_call.1} parent=1 // loop_header_branch
      %19 = sbr.rel (%p17) target = $region8
    $region5: #{tpu_custom_call.1} parent=1 // loop_body
      %s21 = ssub.s32 %s16, 1
      %s22 = ssub.s32 %s16, 2
      %s23 = sadd.s32 %s16, 1
      %s24 = ssub.s32 %s16, %s23
      %p25 = scmp.eq.s32.totalorder %s24, 0
      %s27 = sadd.s32 %s26, 1
      %s28 = scalar_select %p25, %s26, %s27
      %p31 = pneg %p25
      %p32 = scmp.eq.s32.totalorder %s16, 1
      %p33 = por %p31, %p32
      %p34 = scmp.ne.s32.totalorder %s26, %s29
      %p35 = scmp.eq.s32.totalorder %s16, 0
      %p36 = por %p34, %p35
      %p37 = scmp.ne.s32.totalorder %s26, %s29
      %p38 = scmp.eq.s32.totalorder %s21, 1
      %p39 = por %p37, %p38
      %p40 = scmp.ne.s32.totalorder %s29, %s30
      %p41 = scmp.eq.s32.totalorder %s21, 0
      %p42 = por %p40, %p41
      %p43 = scmp.ne.s32.totalorder %s29, %s30
      %p44 = scmp.eq.s32.totalorder %s22, 1
      %p45 = por %p43, %p44
      %p47 = scmp.ne.s32.totalorder %s30, %s46
      %p48 = scmp.eq.s32.totalorder %s22, 0
      %p49 = por %p47, %p48
      %s51 = sadd.s32 %s50, 1
      %p54 = scmp.eq.s32.totalorder %s16, 1
      %p55 = scmp.ne.s32.totalorder %s50, %s52
      %p56 = scmp.eq.s32.totalorder %s16, 0
      %p57 = por %p55, %p56
      %p58 = scmp.ne.s32.totalorder %s50, %s52
      %p59 = scmp.eq.s32.totalorder %s21, 1
      %p60 = por %p58, %p59
      %p61 = scmp.ne.s32.totalorder %s52, %s53
      %p62 = scmp.eq.s32.totalorder %s21, 0
      %p63 = por %p61, %p62
      %p64 = scmp.ne.s32.totalorder %s52, %s53
      %p65 = scmp.eq.s32.totalorder %s22, 1
      %p66 = por %p64, %p65
      %p68 = scmp.ne.s32.totalorder %s53, %s67
      %p69 = scmp.eq.s32.totalorder %s22, 0
      %p70 = por %p68, %p69
      %s72 = sadd.s32 %s71, 1
      %p75 = scmp.eq.s32.totalorder %s16, 1
      %p76 = scmp.ne.s32.totalorder %s71, %s73
      %p77 = scmp.eq.s32.totalorder %s16, 0
      %p78 = por %p76, %p77
      %p79 = scmp.ne.s32.totalorder %s71, %s73
      %p80 = scmp.eq.s32.totalorder %s21, 1
      %p81 = por %p79, %p80
      %p82 = scmp.ne.s32.totalorder %s73, %s74
      %p83 = scmp.eq.s32.totalorder %s21, 0
      %p84 = por %p82, %p83
      %p85 = scmp.ne.s32.totalorder %s73, %s74
      %p86 = scmp.eq.s32.totalorder %s22, 1
      %p87 = por %p85, %p86
      %p89 = scmp.ne.s32.totalorder %s74, %s88
      %p90 = scmp.eq.s32.totalorder %s22, 0
      %p91 = por %p89, %p90
      %s93 = sadd.s32 %s92, 1
      %p96 = scmp.eq.s32.totalorder %s16, 1
      %p97 = scmp.ne.s32.totalorder %s92, %s94
      %p98 = scmp.eq.s32.totalorder %s16, 0
      %p99 = por %p97, %p98
      %p100 = scmp.ne.s32.totalorder %s92, %s94
      %p101 = scmp.eq.s32.totalorder %s21, 1
      %p102 = por %p100, %p101
      %p103 = scmp.ne.s32.totalorder %s94, %s95
      %p104 = scmp.eq.s32.totalorder %s21, 0
      %p105 = por %p103, %p104
      %p106 = scmp.ne.s32.totalorder %s94, %s95
      %p107 = scmp.eq.s32.totalorder %s22, 1
      %p108 = por %p106, %p107
      %p110 = scmp.ne.s32.totalorder %s95, %s109
      %p111 = scmp.eq.s32.totalorder %s22, 0
      %p112 = por %p110, %p111
      %s113 = ssub.s32 %s16, %s23
      %p114 = scmp.eq.s32.totalorder %s113, 0
      %s116 = sadd.s32 %s115, 1
      %s117 = scalar_select %p114, %s115, %s116
      %p120 = pneg %p114
      %p121 = scmp.eq.s32.totalorder %s16, 1
      %p122 = por %p120, %p121
      %p123 = scmp.ne.s32.totalorder %s115, %s118
      %p124 = scmp.eq.s32.totalorder %s16, 0
      %p125 = por %p123, %p124
      %p126 = scmp.ne.s32.totalorder %s115, %s118
      %p127 = scmp.eq.s32.totalorder %s21, 1
      %p128 = por %p126, %p127
      %p129 = scmp.ne.s32.totalorder %s118, %s119
      %p130 = scmp.eq.s32.totalorder %s21, 0
      %p131 = por %p129, %p130
      %p132 = scmp.ne.s32.totalorder %s118, %s119
      %p133 = scmp.eq.s32.totalorder %s22, 1
      %p134 = por %p132, %p133
      %p136 = scmp.ne.s32.totalorder %s119, %s135
      %p137 = scmp.eq.s32.totalorder %s22, 0
      %p138 = por %p136, %p137
      %p139 = scmp.le.s32.totalorder 1, %s16
      %p140 = scmp.lt.s32.totalorder %s16, 3
      %p141 = pnand %p139, %p140
      %p142 = pneg %p141
      // Predicated region
      $region9: #{tpu_custom_call.1} parent=5 // pred_check
        _
      $region10: #{tpu_custom_call.1} parent=5 // pred_check_branch
        %144 = sbr.rel (%p141) target = $region12
      $region11: #{tpu_custom_call.1} parent=5 // pred_region
        %s145 = ssub.s32 %s16, 1
        // Predicated region
        $region13: #{tpu_custom_call.1} parent=11 // pred_check
          %p146 = pneg %p63
        $region14: #{tpu_custom_call.1} parent=11 // pred_check_branch
          %148 = sbr.rel (%p146) target = $region16
        $region15: #{tpu_custom_call.1} parent=11 // pred_region
          _
        $region16: #{tpu_custom_call.1} parent=11 // pred_fallthru
          _
        // Predicated region
        $region17: #{tpu_custom_call.1} parent=11 // pred_check
          %p149 = pneg %p84
        $region18: #{tpu_custom_call.1} parent=11 // pred_check_branch
          %151 = sbr.rel (%p149) target = $region20
        $region19: #{tpu_custom_call.1} parent=11 // pred_region
          _
        $region20: #{tpu_custom_call.1} parent=11 // pred_fallthru
          _
        // Predicated region
        $region21: #{tpu_custom_call.1} parent=11 // pred_check
          %p152 = pneg %p105
        $region22: #{tpu_custom_call.1} parent=11 // pred_check_branch
          %154 = sbr.rel (%p152) target = $region24
        $region23: #{tpu_custom_call.1} parent=11 // pred_region
          _
        $region24: #{tpu_custom_call.1} parent=11 // pred_fallthru
          _
      $region12: #{tpu_custom_call.1} parent=5 // pred_fallthru
        _
      %p155 = scmp.lt.s32.totalorder %s16, 2
      // Predicated region
      $region25: #{tpu_custom_call.1} parent=5 // pred_check
        %p156 = pneg %p155
      $region26: #{tpu_custom_call.1} parent=5 // pred_check_branch
        %158 = sbr.rel (%p156) target = $region28
      $region27: #{tpu_custom_call.1} parent=5 // pred_region
        // Predicated region
        $region29: #{tpu_custom_call.1} parent=27 // pred_check
          %p159 = pneg %p36
        $region30: #{tpu_custom_call.1} parent=27 // pred_check_branch
          %161 = sbr.rel (%p159) target = $region32
        $region31: #{tpu_custom_call.1} parent=27 // pred_region
          %s162 = sand.u32 %s26, 1
          %s163 = scalar_lea.sflag [#allocation3], %s162
          %s164 = sand.u32 %s26, 1
          %s165 = smul.addr %s164, 24
          %s166 = scalar_lea.vmem [#allocation2], %s165
          %s168 = ssub.s32 384, 384
          %169 = vsyncadd %s163, %s168
          %s170 = smul.addr %s16, 3
          %s171 = smul.addr %s170, 128
          %s172 = scalar_lea.hbm %s0, %s171
          %s174 = sshll.u32 %s166, 4
          %s175 = int_to_ptr.vmem [resolvable:$true] %s174
          %177 = dma.hbm_to_vmem [thread:$0]  %s172, 384, %s175, %s163
        $region32: #{tpu_custom_call.1} parent=27 // pred_fallthru
          _
      $region28: #{tpu_custom_call.1} parent=5 // pred_fallthru
        _
      %p178 = scmp.le.s32.totalorder 1, %s16
      %p179 = scmp.lt.s32.totalorder %s16, 3
      %p180 = pnand %p178, %p179
      %p181 = pneg %p180
      // Predicated region
      $region33: #{tpu_custom_call.1} parent=5 // pred_check
        _
      $region34: #{tpu_custom_call.1} parent=5 // pred_check_branch
        %183 = sbr.rel (%p180) target = $region36
      $region35: #{tpu_custom_call.1} parent=5 // pred_region
        %s184 = ssub.s32 %s16, 1
        %s185 = sand.u32 %s29, 1
        %s186 = scalar_lea.sflag [#allocation3], %s185
        %s187 = sand.u32 %s29, 1
        %s188 = smul.addr %s187, 24
        %s189 = scalar_lea.vmem [#allocation2], %s188
        // Predicated region
        $region37: #{tpu_custom_call.1} parent=35 // pred_check
          %p190 = pneg %p42
        $region38: #{tpu_custom_call.1} parent=35 // pred_check_branch
          %192 = sbr.rel (%p190) target = $region40
        $region39: #{tpu_custom_call.1} parent=35 // pred_region
          %193 = dma.done %s186, 384
        $region40: #{tpu_custom_call.1} parent=35 // pred_fallthru
          _
        %s194 = sand.u32 %s29, 1
        %s195 = scalar_lea.sflag [#allocation3], %s194
        %s196 = sand.u32 %s29, 1
        %s197 = smul.addr %s196, 24
        %s198 = scalar_lea.vmem [#allocation2], %s197
        %p199 = pneg %p42
        %p200 = pneg %p39
        %p201 = pneg %p63
        %p202 = pneg %p60
        %p203 = pneg %p84
        %p204 = pneg %p81
        %p205 = pneg %p105
        %p206 = pneg %p102
        %p207 = pneg %p131
        %p208 = pneg %p128
        %s209 = sand.u32 %s118, 1
        %s210 = scalar_lea.sflag [#allocation4], %s209
        %s211 = sand.u32 %s118, 1
        %s212 = smul.addr %s211, 24
        %s213 = scalar_lea.vmem [#allocation5], %s212
        %v214 = vld [vmem:[%s3] sm:$0x7]
        %v216 = vlaneseq
        %v217 = vshrl.u32 %v216, 7
        %v218 = vsub.s32 0, %v217
        %v219 = vrot.slane %v214, %v218
        %v220 = vlaneseq
        %v221 = vshrl.u32 %v220, 7
        %v222 = vsub.s32 1, %v221
        %v223 = vrot.slane %v214, %v222
        %v224 = vlaneseq
        %v225 = vshrl.u32 %v224, 7
        %v226 = vsub.s32 2, %v225
        %v227 = vrot.slane %v214, %v226
        %v231 = vld [vmem:[%s189] sm:$0xff]
        %v232 = vld [vmem:[%s189 + $0x8] sm:$0xff]
        %v233 = vld [vmem:[%s189 + $0x10] sm:$0xff]
        %234 = vrot.lane.b32.xlu0 %v231, 19
        %v235 = vpop.permute.xlu0 %234
        %236 = vrot.lane.b32.xlu0 %v232, 19
        %v237 = vpop.permute.xlu0 %236
        %238 = vrot.lane.b32.xlu0 %v233, 19
        %v239 = vpop.permute.xlu0 %238
        %v240 = vlaneseq
        %v241 = vand.u32 %v240, 127
        %vm242 = vcmp.lt.s32.totalorder %v241, 19
        %v243 = vsel %vm242, %v237, %v239
        %v244 = vsel %vm242, %v235, %v237
        %v245 = vsel %vm242, %v239, %v235
        %246 = vrot.lane.b32.xlu0 %v231, 18
        %v247 = vpop.permute.xlu0 %246
        %248 = vrot.lane.b32.xlu0 %v232, 18
        %v249 = vpop.permute.xlu0 %248
        %250 = vrot.lane.b32.xlu0 %v233, 18
        %v251 = vpop.permute.xlu0 %250
        %vm252 = vcmp.lt.s32.totalorder %v241, 18
        %v253 = vsel %vm252, %v249, %v251
        %v254 = vsel %vm252, %v247, %v249
        %v255 = vsel %vm252, %v251, %v247
        %256 = vrot.lane.b32.xlu0 %v231, 17
        %v257 = vpop.permute.xlu0 %256
        %258 = vrot.lane.b32.xlu0 %v232, 17
        %v259 = vpop.permute.xlu0 %258
        %260 = vrot.lane.b32.xlu0 %v233, 17
        %v261 = vpop.permute.xlu0 %260
        %vm262 = vcmp.lt.s32.totalorder %v241, 17
        %v263 = vsel %vm262, %v259, %v261
        %v264 = vsel %vm262, %v257, %v259
        %v265 = vsel %vm262, %v261, %v257
        %266 = vrot.lane.b32.xlu0 %v231, 1
        %v267 = vpop.permute.xlu0 %266
        %268 = vrot.lane.b32.xlu0 %v232, 1
        %v269 = vpop.permute.xlu0 %268
        %270 = vrot.lane.b32.xlu0 %v233, 1
        %v271 = vpop.permute.xlu0 %270
        %vm272 = vcmp.lt.s32.totalorder %v241, 1
        %v273 = vsel %vm272, %v269, %v271
        %v274 = vsel %vm272, %v267, %v269
        %v275 = vsel %vm272, %v271, %v267
        %276 = vrot.lane.b32.xlu0 %v231, 127
        %v277 = vpop.permute.xlu0 %276
        %278 = vrot.lane.b32.xlu0 %v232, 127
        %v279 = vpop.permute.xlu0 %278
        %280 = vrot.lane.b32.xlu0 %v233, 127
        %v281 = vpop.permute.xlu0 %280
        %vm282 = vcmp.lt.s32.totalorder %v241, 127
        %v283 = vsel %vm282, %v279, %v281
        %v284 = vsel %vm282, %v277, %v279
        %v285 = vsel %vm282, %v281, %v277
        %286 = vrot.lane.b32.xlu0 %v231, 111
        %v287 = vpop.permute.xlu0 %286
        %288 = vrot.lane.b32.xlu0 %v232, 111
        %v289 = vpop.permute.xlu0 %288
        %290 = vrot.lane.b32.xlu0 %v233, 111
        %v291 = vpop.permute.xlu0 %290
        %vm292 = vcmp.lt.s32.totalorder %v241, 111
        %v293 = vsel %vm292, %v289, %v291
        %v294 = vsel %vm292, %v287, %v289
        %v295 = vsel %vm292, %v291, %v287
        %296 = vrot.lane.b32.xlu0 %v231, 110
        %v297 = vpop.permute.xlu0 %296
        %298 = vrot.lane.b32.xlu0 %v232, 110
        %v299 = vpop.permute.xlu0 %298
        %300 = vrot.lane.b32.xlu0 %v233, 110
        %v301 = vpop.permute.xlu0 %300
        %vm302 = vcmp.lt.s32.totalorder %v241, 110
        %v303 = vsel %vm302, %v299, %v301
        %v304 = vsel %vm302, %v297, %v299
        %v305 = vsel %vm302, %v301, %v297
        %306 = vrot.lane.b32.xlu0 %v231, 109
        %v307 = vpop.permute.xlu0 %306
        %308 = vrot.lane.b32.xlu0 %v232, 109
        %v309 = vpop.permute.xlu0 %308
        %310 = vrot.lane.b32.xlu0 %v233, 109
        %v311 = vpop.permute.xlu0 %310
        %vm312 = vcmp.lt.s32.totalorder %v241, 109
        %v313 = vsel %vm312, %v309, %v311
        %v314 = vsel %vm312, %v307, %v309
        %v315 = vsel %vm312, %v311, %v307
        %v316 = vld [vmem:[%s1] sm:$0xff]
        %v317 = vld [vmem:[%s2] sm:$0xff]
        %319 = vset.pattern.permute.xlu0 0
        %320 = vperm.xlu0 %319, %v317
        %v321 = vpop.permute.xlu0 %320
        %vm323 = vcmask 588800
        %v325 = vsel %vm323, %v316, 0
        %327 = vmatprep.subr.mxu0 %v244
        %328 = vmatpush1.msra.mxu0 %v245
        %329 = vmatprep.subr.mxu0 %v254
        %330 = vmatpush1.msra.mxu0 %v255
        %331 = vmatprep.subr.mxu0 %v264
        %332 = vmatpush1.msra.mxu0 %v265
        %333 = vmatprep.subr.mxu0 %v274
        %334 = vmatpush1.msra.mxu0 %v275
        %335 = vmatprep.subr.mxu0 %v232
        %336 = vmatpush1.msra.mxu0 %v231
        %337 = vmatprep.subr.mxu0 %v283
        %338 = vmatpush1.msra.mxu0 %v284
        %339 = vmatprep.subr.mxu0 %v293
        %340 = vmatpush1.msra.mxu0 %v294
        %341 = vmatprep.subr.mxu0 %v303
        %342 = vmatpush1.msra.mxu0 %v304
        %343 = vmatprep.subr.mxu0 %v313
        %344 = vmatpush1.msra.mxu0 %v314
        %345 = vmatprep.subr.mxu0 0.0
        %346 = vmatpush1.msra.mxu0 0.0
        %347 = vmatprep.subr.mxu0 0.0
        %348 = vmatpush1.msra.mxu0 0.0
        %349 = vmatprep.subr.mxu0 0.0
        %350 = vmatpush1.msra.mxu0 0.0
        %351 = vmatprep.subr.mxu0 0.0
        %352 = vmatpush1.msra.mxu0 0.0
        %353 = vmatprep.subr.mxu0 0.0
        %354 = vmatpush1.msra.mxu0 0.0
        %355 = vmatprep.subr.mxu0 0.0
        %356 = vmatpush1.msra.mxu0 0.0
        %357 = vmatprep.subr.mxu0 0.0
        %358 = vmatpush1.msra.mxu0 0.0
        %359 = vmatprep.subr.mxu0 0.0
        %360 = vmatpush1.msra.mxu0 0.0
        %361 = vmatprep.subr.mxu0 0.0
        %362 = vmatpush1.msra.mxu0 0.0
        %363 = vmatprep.subr.mxu0 0.0
        %364 = vmatpush1.msra.mxu0 0.0
        %365 = vmatprep.subr.mxu0 0.0
        %366 = vmatpush1.msra.mxu0 0.0
        %367 = vmatprep.subr.mxu0 0.0
        %368 = vmatpush1.msra.mxu0 0.0
        %369 = vmatprep.subr.mxu0 0.0
        %370 = vmatpush1.msra.mxu0 0.0
        %371 = vmatprep.subr.mxu0 0.0
        %372 = vmatpush1.msra.mxu0 0.0
        %373 = vmatprep.subr.mxu0 0.0
        %374 = vmatpush1.msra.mxu0 0.0
        %375 = vmatprep.subr.mxu0 0.0
        %376 = vmatpush1.msra.mxu0 0.0
        %377 = vmatprep.subr.mxu0 0.0
        %378 = vmatpush1.msra.mxu0 0.0
        %379 = vmatprep.subr.mxu0 0.0
        %380 = vmatpush1.msra.mxu0 0.0
        %381 = vmatprep.subr.mxu0 0.0
        %382 = vmatpush1.msra.mxu0 0.0
        %383 = vmatprep.subr.mxu0 0.0
        %384 = vmatpush1.msra.mxu0 0.0
        %385 = vmatprep.subr.mxu0 0.0
        %386 = vmatpush1.msra.mxu0 0.0
        %387 = vmatprep.subr.mxu0 0.0
        %388 = vmatpush1.msra.mxu0 0.0
        %389 = vmatprep.subr.mxu0 0.0
        %390 = vmatpush1.msra.mxu0 0.0
        %391 = vmatprep.mubr.f32.mxu0 0.0
        %392 = vmatmul.mubr.f32.gmra.mrb[0].mxu0 %v325
        %v393 = vpop.f32.mrb[0].mxu0
        %v394 = vadd.f32 %v321, %v393
        %v395 = vpop.f32.mrb[0].mxu0
        %v396 = vadd.f32 %v321, %v395
        %397 = vdwg.mxu0
        %398 = vmatprep.subr.mxu0 0.0
        %399 = vmatpush1.msra.mxu0 %v243
        %400 = vmatprep.subr.mxu0 0.0
        %401 = vmatpush1.msra.mxu0 %v253
        %402 = vmatprep.subr.mxu0 0.0
        %403 = vmatpush1.msra.mxu0 %v263
        %404 = vmatprep.subr.mxu0 0.0
        %405 = vmatpush1.msra.mxu0 %v273
        %406 = vmatprep.subr.mxu0 0.0
        %407 = vmatpush1.msra.mxu0 %v233
        %408 = vmatprep.subr.mxu0 0.0
        %409 = vmatpush1.msra.mxu0 %v285
        %410 = vmatprep.subr.mxu0 0.0
        %411 = vmatpush1.msra.mxu0 %v295
        %412 = vmatprep.subr.mxu0 0.0
        %413 = vmatpush1.msra.mxu0 %v305
        %414 = vmatprep.subr.mxu0 0.0
        %415 = vmatpush1.msra.mxu0 %v315
        %416 = vmatprep.subr.mxu0 0.0
        %417 = vmatpush1.msra.mxu0 0.0
        %418 = vmatprep.subr.mxu0 0.0
        %419 = vmatpush1.msra.mxu0 0.0
        %420 = vmatprep.subr.mxu0 0.0
        %421 = vmatpush1.msra.mxu0 0.0
        %422 = vmatprep.subr.mxu0 0.0
        %423 = vmatpush1.msra.mxu0 0.0
        %424 = vmatprep.subr.mxu0 0.0
        %425 = vmatpush1.msra.mxu0 0.0
        %426 = vmatprep.subr.mxu0 0.0
        %427 = vmatpush1.msra.mxu0 0.0
        %428 = vmatprep.subr.mxu0 0.0
        %429 = vmatpush1.msra.mxu0 0.0
        %430 = vmatprep.subr.mxu0 0.0
        %431 = vmatpush1.msra.mxu0 0.0
        %432 = vmatprep.subr.mxu0 0.0
        %433 = vmatpush1.msra.mxu0 0.0
        %434 = vmatprep.subr.mxu0 0.0
        %435 = vmatpush1.msra.mxu0 0.0
        %436 = vmatprep.subr.mxu0 0.0
        %437 = vmatpush1.msra.mxu0 0.0
        %438 = vmatprep.subr.mxu0 0.0
        %439 = vmatpush1.msra.mxu0 0.0
        %440 = vmatprep.subr.mxu0 0.0
        %441 = vmatpush1.msra.mxu0 0.0
        %442 = vmatprep.subr.mxu0 0.0
        %443 = vmatpush1.msra.mxu0 0.0
        %444 = vmatprep.subr.mxu0 0.0
        %445 = vmatpush1.msra.mxu0 0.0
        %446 = vmatprep.subr.mxu0 0.0
        %447 = vmatpush1.msra.mxu0 0.0
        %448 = vmatprep.subr.mxu0 0.0
        %449 = vmatpush1.msra.mxu0 0.0
        %450 = vmatprep.subr.mxu0 0.0
        %451 = vmatpush1.msra.mxu0 0.0
        %452 = vmatprep.subr.mxu0 0.0
        %453 = vmatpush1.msra.mxu0 0.0
        %454 = vmatprep.subr.mxu0 0.0
        %455 = vmatpush1.msra.mxu0 0.0
        %456 = vmatprep.subr.mxu0 0.0
        %457 = vmatpush1.msra.mxu0 0.0
        %458 = vmatprep.subr.mxu0 0.0
        %459 = vmatpush1.msra.mxu0 0.0
        %460 = vmatprep.subr.mxu0 0.0
        %461 = vmatpush1.msra.mxu0 0.0
        %462 = vmatprep.mubr.f32.mxu0 0.0
        %463 = vmatmul.mubr.f32.gmra.mrb[0].mxu0 %v325
        %v464 = vpop.f32.mrb[0].mxu0
        %v465 = vadd.f32 %v321, %v464
        %v466 = vpop.f32.mrb[0].mxu0
        %467 = vdwg.mxu0
        %v468 = vmax.f32 %v394, 0.0
        %v469 = vmax.f32 %v396, 0.0
        %v470 = vmax.f32 %v465, 0.0
        %v471 = vmul.f32 %v468, %v219
        %v472 = vmul.f32 %v469, %v223
        %v473 = vmul.f32 %v470, %v227
        %474 = vrot.lane.b32.xlu0 %v471, 19
        %v475 = vpop.permute.xlu0 %474
        %476 = vrot.lane.b32.xlu0 %v472, 19
        %v477 = vpop.permute.xlu0 %476
        %478 = vrot.lane.b32.xlu0 %v473, 19
        %v479 = vpop.permute.xlu0 %478
        %v480 = vsel %vm242, %v477, %v479
        %v481 = vsel %vm242, %v475, %v477
        %v482 = vsel %vm242, %v479, %v475
        %483 = vrot.lane.b32.xlu0 %v471, 18
        %v484 = vpop.permute.xlu0 %483
        %485 = vrot.lane.b32.xlu0 %v472, 18
        %v486 = vpop.permute.xlu0 %485
        %487 = vrot.lane.b32.xlu0 %v473, 18
        %v488 = vpop.permute.xlu0 %487
        %v489 = vsel %vm252, %v486, %v488
        %v490 = vsel %vm252, %v484, %v486
        %v491 = vsel %vm252, %v488, %v484
        %492 = vrot.lane.b32.xlu0 %v471, 17
        %v493 = vpop.permute.xlu0 %492
        %494 = vrot.lane.b32.xlu0 %v472, 17
        %v495 = vpop.permute.xlu0 %494
        %496 = vrot.lane.b32.xlu0 %v473, 17
        %v497 = vpop.permute.xlu0 %496
        %v498 = vsel %vm262, %v495, %v497
        %v499 = vsel %vm262, %v493, %v495
        %v500 = vsel %vm262, %v497, %v493
        %501 = vrot.lane.b32.xlu0 %v471, 1
        %v502 = vpop.permute.xlu0 %501
        %503 = vrot.lane.b32.xlu0 %v472, 1
        %v504 = vpop.permute.xlu0 %503
        %505 = vrot.lane.b32.xlu0 %v473, 1
        %v506 = vpop.permute.xlu0 %505
        %v507 = vsel %vm272, %v504, %v506
        %v508 = vsel %vm272, %v502, %v504
        %v509 = vsel %vm272, %v506, %v502
        %510 = vrot.lane.b32.xlu0 %v471, 127
        %v511 = vpop.permute.xlu0 %510
        %512 = vrot.lane.b32.xlu0 %v472, 127
        %v513 = vpop.permute.xlu0 %512
        %514 = vrot.lane.b32.xlu0 %v473, 127
        %v515 = vpop.permute.xlu0 %514
        %v516 = vsel %vm282, %v513, %v515
        %v517 = vsel %vm282, %v511, %v513
        %v518 = vsel %vm282, %v515, %v511
        %519 = vrot.lane.b32.xlu0 %v471, 111
        %v520 = vpop.permute.xlu0 %519
        %521 = vrot.lane.b32.xlu0 %v472, 111
        %v522 = vpop.permute.xlu0 %521
        %523 = vrot.lane.b32.xlu0 %v473, 111
        %v524 = vpop.permute.xlu0 %523
        %v525 = vsel %vm292, %v522, %v524
        %v526 = vsel %vm292, %v520, %v522
        %v527 = vsel %vm292, %v524, %v520
        %528 = vrot.lane.b32.xlu0 %v471, 110
        %v529 = vpop.permute.xlu0 %528
        %530 = vrot.lane.b32.xlu0 %v472, 110
        %v531 = vpop.permute.xlu0 %530
        %532 = vrot.lane.b32.xlu0 %v473, 110
        %v533 = vpop.permute.xlu0 %532
        %v534 = vsel %vm302, %v531, %v533
        %v535 = vsel %vm302, %v529, %v531
        %v536 = vsel %vm302, %v533, %v529
        %537 = vrot.lane.b32.xlu0 %v471, 109
        %v538 = vpop.permute.xlu0 %537
        %539 = vrot.lane.b32.xlu0 %v472, 109
        %v540 = vpop.permute.xlu0 %539
        %541 = vrot.lane.b32.xlu0 %v473, 109
        %v542 = vpop.permute.xlu0 %541
        %v543 = vsel %vm312, %v540, %v542
        %v544 = vsel %vm312, %v538, %v540
        %v545 = vsel %vm312, %v542, %v538
        %s546 = scalar_lea.vmem %s1, 8
        %v547 = vld [vmem:[%s546] sm:$0xff]
        %s548 = scalar_lea.vmem %s2, 8
        %v549 = vld [vmem:[%s548] sm:$0xff]
        %551 = vset.pattern.permute.xlu0 0
        %552 = vperm.xlu0 %551, %v549
        %v553 = vpop.permute.xlu0 %552
        %v556 = vsel %vm323, %v547, 0
        %558 = vmatprep.subr.mxu0 %v481
        %559 = vmatpush1.msra.mxu0 %v482
        %560 = vmatprep.subr.mxu0 %v490
        %561 = vmatpush1.msra.mxu0 %v491
        %562 = vmatprep.subr.mxu0 %v499
        %563 = vmatpush1.msra.mxu0 %v500
        %564 = vmatprep.subr.mxu0 %v508
        %565 = vmatpush1.msra.mxu0 %v509
        %566 = vmatprep.subr.mxu0 %v472
        %567 = vmatpush1.msra.mxu0 %v471
        %568 = vmatprep.subr.mxu0 %v516
        %569 = vmatpush1.msra.mxu0 %v517
        %570 = vmatprep.subr.mxu0 %v525
        %571 = vmatpush1.msra.mxu0 %v526
        %572 = vmatprep.subr.mxu0 %v534
        %573 = vmatpush1.msra.mxu0 %v535
        %574 = vmatprep.subr.mxu0 %v543
        %575 = vmatpush1.msra.mxu0 %v544
        %576 = vmatprep.subr.mxu0 0.0
        %577 = vmatpush1.msra.mxu0 0.0
        %578 = vmatprep.subr.mxu0 0.0
        %579 = vmatpush1.msra.mxu0 0.0
        %580 = vmatprep.subr.mxu0 0.0
        %581 = vmatpush1.msra.mxu0 0.0
        %582 = vmatprep.subr.mxu0 0.0
        %583 = vmatpush1.msra.mxu0 0.0
        %584 = vmatprep.subr.mxu0 0.0
        %585 = vmatpush1.msra.mxu0 0.0
        %586 = vmatprep.subr.mxu0 0.0
        %587 = vmatpush1.msra.mxu0 0.0
        %588 = vmatprep.subr.mxu0 0.0
        %589 = vmatpush1.msra.mxu0 0.0
        %590 = vmatprep.subr.mxu0 0.0
        %591 = vmatpush1.msra.mxu0 0.0
        %592 = vmatprep.subr.mxu0 0.0
        %593 = vmatpush1.msra.mxu0 0.0
        %594 = vmatprep.subr.mxu0 0.0
        %595 = vmatpush1.msra.mxu0 0.0
        %596 = vmatprep.subr.mxu0 0.0
        %597 = vmatpush1.msra.mxu0 0.0
        %598 = vmatprep.subr.mxu0 0.0
        %599 = vmatpush1.msra.mxu0 0.0
        %600 = vmatprep.subr.mxu0 0.0
        %601 = vmatpush1.msra.mxu0 0.0
        %602 = vmatprep.subr.mxu0 0.0
        %603 = vmatpush1.msra.mxu0 0.0
        %604 = vmatprep.subr.mxu0 0.0
        %605 = vmatpush1.msra.mxu0 0.0
        %606 = vmatprep.subr.mxu0 0.0
        %607 = vmatpush1.msra.mxu0 0.0
        %608 = vmatprep.subr.mxu0 0.0
        %609 = vmatpush1.msra.mxu0 0.0
        %610 = vmatprep.subr.mxu0 0.0
        %611 = vmatpush1.msra.mxu0 0.0
        %612 = vmatprep.subr.mxu0 0.0
        %613 = vmatpush1.msra.mxu0 0.0
        %614 = vmatprep.subr.mxu0 0.0
        %615 = vmatpush1.msra.mxu0 0.0
        %616 = vmatprep.subr.mxu0 0.0
        %617 = vmatpush1.msra.mxu0 0.0
        %618 = vmatprep.subr.mxu0 0.0
        %619 = vmatpush1.msra.mxu0 0.0
        %620 = vmatprep.subr.mxu0 0.0
        %621 = vmatpush1.msra.mxu0 0.0
        %622 = vmatprep.mubr.f32.mxu0 0.0
        %623 = vmatmul.mubr.f32.gmra.mrb[0].mxu0 %v556
        %v624 = vpop.f32.mrb[0].mxu0
        %v625 = vadd.f32 %v553, %v624
        %v626 = vpop.f32.mrb[0].mxu0
        %v627 = vadd.f32 %v553, %v626
        %628 = vdwg.mxu0
        %629 = vmatprep.subr.mxu0 0.0
        %630 = vmatpush1.msra.mxu0 %v480
        %631 = vmatprep.subr.mxu0 0.0
        %632 = vmatpush1.msra.mxu0 %v489
        %633 = vmatprep.subr.mxu0 0.0
        %634 = vmatpush1.msra.mxu0 %v498
        %635 = vmatprep.subr.mxu0 0.0
        %636 = vmatpush1.msra.mxu0 %v507
        %637 = vmatprep.subr.mxu0 0.0
        %638 = vmatpush1.msra.mxu0 %v473
        %639 = vmatprep.subr.mxu0 0.0
        %640 = vmatpush1.msra.mxu0 %v518
        %641 = vmatprep.subr.mxu0 0.0
        %642 = vmatpush1.msra.mxu0 %v527
        %643 = vmatprep.subr.mxu0 0.0
        %644 = vmatpush1.msra.mxu0 %v536
        %645 = vmatprep.subr.mxu0 0.0
        %646 = vmatpush1.msra.mxu0 %v545
        %647 = vmatprep.subr.mxu0 0.0
        %648 = vmatpush1.msra.mxu0 0.0
        %649 = vmatprep.subr.mxu0 0.0
        %650 = vmatpush1.msra.mxu0 0.0
        %651 = vmatprep.subr.mxu0 0.0
        %652 = vmatpush1.msra.mxu0 0.0
        %653 = vmatprep.subr.mxu0 0.0
        %654 = vmatpush1.msra.mxu0 0.0
        %655 = vmatprep.subr.mxu0 0.0
        %656 = vmatpush1.msra.mxu0 0.0
        %657 = vmatprep.subr.mxu0 0.0
        %658 = vmatpush1.msra.mxu0 0.0
        %659 = vmatprep.subr.mxu0 0.0
        %660 = vmatpush1.msra.mxu0 0.0
        %661 = vmatprep.subr.mxu0 0.0
        %662 = vmatpush1.msra.mxu0 0.0
        %663 = vmatprep.subr.mxu0 0.0
        %664 = vmatpush1.msra.mxu0 0.0
        %665 = vmatprep.subr.mxu0 0.0
        %666 = vmatpush1.msra.mxu0 0.0
        %667 = vmatprep.subr.mxu0 0.0
        %668 = vmatpush1.msra.mxu0 0.0
        %669 = vmatprep.subr.mxu0 0.0
        %670 = vmatpush1.msra.mxu0 0.0
        %671 = vmatprep.subr.mxu0 0.0
        %672 = vmatpush1.msra.mxu0 0.0
        %673 = vmatprep.subr.mxu0 0.0
        %674 = vmatpush1.msra.mxu0 0.0
        %675 = vmatprep.subr.mxu0 0.0
        %676 = vmatpush1.msra.mxu0 0.0
        %677 = vmatprep.subr.mxu0 0.0
        %678 = vmatpush1.msra.mxu0 0.0
        %679 = vmatprep.subr.mxu0 0.0
        %680 = vmatpush1.msra.mxu0 0.0
        %681 = vmatprep.subr.mxu0 0.0
        %682 = vmatpush1.msra.mxu0 0.0
        %683 = vmatprep.subr.mxu0 0.0
        %684 = vmatpush1.msra.mxu0 0.0
        %685 = vmatprep.subr.mxu0 0.0
        %686 = vmatpush1.msra.mxu0 0.0
        %687 = vmatprep.subr.mxu0 0.0
        %688 = vmatpush1.msra.mxu0 0.0
        %689 = vmatprep.subr.mxu0 0.0
        %690 = vmatpush1.msra.mxu0 0.0
        %691 = vmatprep.subr.mxu0 0.0
        %692 = vmatpush1.msra.mxu0 0.0
        %693 = vmatprep.mubr.f32.mxu0 0.0
        %694 = vmatmul.mubr.f32.gmra.mrb[0].mxu0 %v556
        %v695 = vpop.f32.mrb[0].mxu0
        %v696 = vadd.f32 %v553, %v695
        %v697 = vpop.f32.mrb[0].mxu0
        %698 = vdwg.mxu0
        %v699 = vmax.f32 %v625, 0.0
        %v700 = vmax.f32 %v627, 0.0
        %v701 = vmax.f32 %v696, 0.0
        %v702 = vmul.f32 %v699, %v219
        %v703 = vmul.f32 %v700, %v223
        %v704 = vmul.f32 %v701, %v227
        %705 = vrot.lane.b32.xlu0 %v702, 19
        %v706 = vpop.permute.xlu0 %705
        %707 = vrot.lane.b32.xlu0 %v703, 19
        %v708 = vpop.permute.xlu0 %707
        %709 = vrot.lane.b32.xlu0 %v704, 19
        %v710 = vpop.permute.xlu0 %709
        %v711 = vsel %vm242, %v708, %v710
        %v712 = vsel %vm242, %v706, %v708
        %v713 = vsel %vm242, %v710, %v706
        %714 = vrot.lane.b32.xlu0 %v702, 18
        %v715 = vpop.permute.xlu0 %714
        %716 = vrot.lane.b32.xlu0 %v703, 18
        %v717 = vpop.permute.xlu0 %716
        %718 = vrot.lane.b32.xlu0 %v704, 18
        %v719 = vpop.permute.xlu0 %718
        %v720 = vsel %vm252, %v717, %v719
        %v721 = vsel %vm252, %v715, %v717
        %v722 = vsel %vm252, %v719, %v715
        %723 = vrot.lane.b32.xlu0 %v702, 17
        %v724 = vpop.permute.xlu0 %723
        %725 = vrot.lane.b32.xlu0 %v703, 17
        %v726 = vpop.permute.xlu0 %725
        %727 = vrot.lane.b32.xlu0 %v704, 17
        %v728 = vpop.permute.xlu0 %727
        %v729 = vsel %vm262, %v726, %v728
        %v730 = vsel %vm262, %v724, %v726
        %v731 = vsel %vm262, %v728, %v724
        %732 = vrot.lane.b32.xlu0 %v702, 1
        %v733 = vpop.permute.xlu0 %732
        %734 = vrot.lane.b32.xlu0 %v703, 1
        %v735 = vpop.permute.xlu0 %734
        %736 = vrot.lane.b32.xlu0 %v704, 1
        %v737 = vpop.permute.xlu0 %736
        %v738 = vsel %vm272, %v735, %v737
        %v739 = vsel %vm272, %v733, %v735
        %v740 = vsel %vm272, %v737, %v733
        %741 = vrot.lane.b32.xlu0 %v702, 127
        %v742 = vpop.permute.xlu0 %741
        %743 = vrot.lane.b32.xlu0 %v703, 127
        %v744 = vpop.permute.xlu0 %743
        %745 = vrot.lane.b32.xlu0 %v704, 127
        %v746 = vpop.permute.xlu0 %745
        %v747 = vsel %vm282, %v744, %v746
        %v748 = vsel %vm282, %v742, %v744
        %v749 = vsel %vm282, %v746, %v742
        %750 = vrot.lane.b32.xlu0 %v702, 111
        %v751 = vpop.permute.xlu0 %750
        %752 = vrot.lane.b32.xlu0 %v703, 111
        %v753 = vpop.permute.xlu0 %752
        %754 = vrot.lane.b32.xlu0 %v704, 111
        %v755 = vpop.permute.xlu0 %754
        %v756 = vsel %vm292, %v753, %v755
        %v757 = vsel %vm292, %v751, %v753
        %v758 = vsel %vm292, %v755, %v751
        %759 = vrot.lane.b32.xlu0 %v702, 110
        %v760 = vpop.permute.xlu0 %759
        %761 = vrot.lane.b32.xlu0 %v703, 110
        %v762 = vpop.permute.xlu0 %761
        %763 = vrot.lane.b32.xlu0 %v704, 110
        %v764 = vpop.permute.xlu0 %763
        %v765 = vsel %vm302, %v762, %v764
        %v766 = vsel %vm302, %v760, %v762
        %v767 = vsel %vm302, %v764, %v760
        %768 = vrot.lane.b32.xlu0 %v702, 109
        %v769 = vpop.permute.xlu0 %768
        %770 = vrot.lane.b32.xlu0 %v703, 109
        %v771 = vpop.permute.xlu0 %770
        %772 = vrot.lane.b32.xlu0 %v704, 109
        %v773 = vpop.permute.xlu0 %772
        %v774 = vsel %vm312, %v771, %v773
        %v775 = vsel %vm312, %v769, %v771
        %v776 = vsel %vm312, %v773, %v769
        %s777 = scalar_lea.vmem %s1, 16
        %v778 = vld [vmem:[%s777] sm:$0xff]
        %s779 = scalar_lea.vmem %s2, 16
        %v780 = vld [vmem:[%s779] sm:$0xff]
        %782 = vset.pattern.permute.xlu0 0
        %783 = vperm.xlu0 %782, %v780
        %v784 = vpop.permute.xlu0 %783
        %v787 = vsel %vm323, %v778, 0
        %789 = vmatprep.subr.mxu0 %v712
        %790 = vmatpush1.msra.mxu0 %v713
        %791 = vmatprep.subr.mxu0 %v721
        %792 = vmatpush1.msra.mxu0 %v722
        %793 = vmatprep.subr.mxu0 %v730
        %794 = vmatpush1.msra.mxu0 %v731
        %795 = vmatprep.subr.mxu0 %v739
        %796 = vmatpush1.msra.mxu0 %v740
        %797 = vmatprep.subr.mxu0 %v703
        %798 = vmatpush1.msra.mxu0 %v702
        %799 = vmatprep.subr.mxu0 %v747
        %800 = vmatpush1.msra.mxu0 %v748
        %801 = vmatprep.subr.mxu0 %v756
        %802 = vmatpush1.msra.mxu0 %v757
        %803 = vmatprep.subr.mxu0 %v765
        %804 = vmatpush1.msra.mxu0 %v766
        %805 = vmatprep.subr.mxu0 %v774
        %806 = vmatpush1.msra.mxu0 %v775
        %807 = vmatprep.subr.mxu0 0.0
        %808 = vmatpush1.msra.mxu0 0.0
        %809 = vmatprep.subr.mxu0 0.0
        %810 = vmatpush1.msra.mxu0 0.0
        %811 = vmatprep.subr.mxu0 0.0
        %812 = vmatpush1.msra.mxu0 0.0
        %813 = vmatprep.subr.mxu0 0.0
        %814 = vmatpush1.msra.mxu0 0.0
        %815 = vmatprep.subr.mxu0 0.0
        %816 = vmatpush1.msra.mxu0 0.0
        %817 = vmatprep.subr.mxu0 0.0
        %818 = vmatpush1.msra.mxu0 0.0
        %819 = vmatprep.subr.mxu0 0.0
        %820 = vmatpush1.msra.mxu0 0.0
        %821 = vmatprep.subr.mxu0 0.0
        %822 = vmatpush1.msra.mxu0 0.0
        %823 = vmatprep.subr.mxu0 0.0
        %824 = vmatpush1.msra.mxu0 0.0
        %825 = vmatprep.subr.mxu0 0.0
        %826 = vmatpush1.msra.mxu0 0.0
        %827 = vmatprep.subr.mxu0 0.0
        %828 = vmatpush1.msra.mxu0 0.0
        %829 = vmatprep.subr.mxu0 0.0
        %830 = vmatpush1.msra.mxu0 0.0
        %831 = vmatprep.subr.mxu0 0.0
        %832 = vmatpush1.msra.mxu0 0.0
        %833 = vmatprep.subr.mxu0 0.0
        %834 = vmatpush1.msra.mxu0 0.0
        %835 = vmatprep.subr.mxu0 0.0
        %836 = vmatpush1.msra.mxu0 0.0
        %837 = vmatprep.subr.mxu0 0.0
        %838 = vmatpush1.msra.mxu0 0.0
        %839 = vmatprep.subr.mxu0 0.0
        %840 = vmatpush1.msra.mxu0 0.0
        %841 = vmatprep.subr.mxu0 0.0
        %842 = vmatpush1.msra.mxu0 0.0
        %843 = vmatprep.subr.mxu0 0.0
        %844 = vmatpush1.msra.mxu0 0.0
        %845 = vmatprep.subr.mxu0 0.0
        %846 = vmatpush1.msra.mxu0 0.0
        %847 = vmatprep.subr.mxu0 0.0
        %848 = vmatpush1.msra.mxu0 0.0
        %849 = vmatprep.subr.mxu0 0.0
        %850 = vmatpush1.msra.mxu0 0.0
        %851 = vmatprep.subr.mxu0 0.0
        %852 = vmatpush1.msra.mxu0 0.0
        %853 = vmatprep.mubr.f32.mxu0 0.0
        %854 = vmatmul.mubr.f32.gmra.mrb[0].mxu0 %v787
        %v855 = vpop.f32.mrb[0].mxu0
        %v856 = vadd.f32 %v784, %v855
        %v857 = vpop.f32.mrb[0].mxu0
        %v858 = vadd.f32 %v784, %v857
        %859 = vdwg.mxu0
        %860 = vmatprep.subr.mxu0 0.0
        %861 = vmatpush1.msra.mxu0 %v711
        %862 = vmatprep.subr.mxu0 0.0
        %863 = vmatpush1.msra.mxu0 %v720
        %864 = vmatprep.subr.mxu0 0.0
        %865 = vmatpush1.msra.mxu0 %v729
        %866 = vmatprep.subr.mxu0 0.0
        %867 = vmatpush1.msra.mxu0 %v738
        %868 = vmatprep.subr.mxu0 0.0
        %869 = vmatpush1.msra.mxu0 %v704
        %870 = vmatprep.subr.mxu0 0.0
        %871 = vmatpush1.msra.mxu0 %v749
        %872 = vmatprep.subr.mxu0 0.0
        %873 = vmatpush1.msra.mxu0 %v758
        %874 = vmatprep.subr.mxu0 0.0
        %875 = vmatpush1.msra.mxu0 %v767
        %876 = vmatprep.subr.mxu0 0.0
        %877 = vmatpush1.msra.mxu0 %v776
        %878 = vmatprep.subr.mxu0 0.0
        %879 = vmatpush1.msra.mxu0 0.0
        %880 = vmatprep.subr.mxu0 0.0
        %881 = vmatpush1.msra.mxu0 0.0
        %882 = vmatprep.subr.mxu0 0.0
        %883 = vmatpush1.msra.mxu0 0.0
        %884 = vmatprep.subr.mxu0 0.0
        %885 = vmatpush1.msra.mxu0 0.0
        %886 = vmatprep.subr.mxu0 0.0
        %887 = vmatpush1.msra.mxu0 0.0
        %888 = vmatprep.subr.mxu0 0.0
        %889 = vmatpush1.msra.mxu0 0.0
        %890 = vmatprep.subr.mxu0 0.0
        %891 = vmatpush1.msra.mxu0 0.0
        %892 = vmatprep.subr.mxu0 0.0
        %893 = vmatpush1.msra.mxu0 0.0
        %894 = vmatprep.subr.mxu0 0.0
        %895 = vmatpush1.msra.mxu0 0.0
        %896 = vmatprep.subr.mxu0 0.0
        %897 = vmatpush1.msra.mxu0 0.0
        %898 = vmatprep.subr.mxu0 0.0
        %899 = vmatpush1.msra.mxu0 0.0
        %900 = vmatprep.subr.mxu0 0.0
        %901 = vmatpush1.msra.mxu0 0.0
        %902 = vmatprep.subr.mxu0 0.0
        %903 = vmatpush1.msra.mxu0 0.0
        %904 = vmatprep.subr.mxu0 0.0
        %905 = vmatpush1.msra.mxu0 0.0
        %906 = vmatprep.subr.mxu0 0.0
        %907 = vmatpush1.msra.mxu0 0.0
        %908 = vmatprep.subr.mxu0 0.0
        %909 = vmatpush1.msra.mxu0 0.0
        %910 = vmatprep.subr.mxu0 0.0
        %911 = vmatpush1.msra.mxu0 0.0
        %912 = vmatprep.subr.mxu0 0.0
        %913 = vmatpush1.msra.mxu0 0.0
        %914 = vmatprep.subr.mxu0 0.0
        %915 = vmatpush1.msra.mxu0 0.0
        %916 = vmatprep.subr.mxu0 0.0
        %917 = vmatpush1.msra.mxu0 0.0
        %918 = vmatprep.subr.mxu0 0.0
        %919 = vmatpush1.msra.mxu0 0.0
        %920 = vmatprep.subr.mxu0 0.0
        %921 = vmatpush1.msra.mxu0 0.0
        %922 = vmatprep.subr.mxu0 0.0
        %923 = vmatpush1.msra.mxu0 0.0
        %924 = vmatprep.mubr.f32.mxu0 0.0
        %925 = vmatmul.mubr.f32.gmra.mrb[0].mxu0 %v787
        %v926 = vpop.f32.mrb[0].mxu0
        %v927 = vadd.f32 %v784, %v926
        %v928 = vpop.f32.mrb[0].mxu0
        %929 = vdwg.mxu0
        %v930 = vmax.f32 %v856, 0.0
        %v931 = vmax.f32 %v858, 0.0
        %v932 = vmax.f32 %v927, 0.0
        %v933 = vmul.f32 %v930, %v219
        %v934 = vmul.f32 %v931, %v223
        %v935 = vmul.f32 %v932, %v227
        %936 = vrot.lane.b32.xlu0 %v933, 19
        %v937 = vpop.permute.xlu0 %936
        %938 = vrot.lane.b32.xlu0 %v934, 19
        %v939 = vpop.permute.xlu0 %938
        %940 = vrot.lane.b32.xlu0 %v935, 19
        %v941 = vpop.permute.xlu0 %940
        %v942 = vsel %vm242, %v939, %v941
        %v943 = vsel %vm242, %v937, %v939
        %v944 = vsel %vm242, %v941, %v937
        %945 = vrot.lane.b32.xlu0 %v933, 18
        %v946 = vpop.permute.xlu0 %945
        %947 = vrot.lane.b32.xlu0 %v934, 18
        %v948 = vpop.permute.xlu0 %947
        %949 = vrot.lane.b32.xlu0 %v935, 18
        %v950 = vpop.permute.xlu0 %949
        %v951 = vsel %vm252, %v948, %v950
        %v952 = vsel %vm252, %v946, %v948
        %v953 = vsel %vm252, %v950, %v946
        %954 = vrot.lane.b32.xlu0 %v933, 17
        %v955 = vpop.permute.xlu0 %954
        %956 = vrot.lane.b32.xlu0 %v934, 17
        %v957 = vpop.permute.xlu0 %956
        %958 = vrot.lane.b32.xlu0 %v935, 17
        %v959 = vpop.permute.xlu0 %958
        %v960 = vsel %vm262, %v957, %v959
        %v961 = vsel %vm262, %v955, %v957
        %v962 = vsel %vm262, %v959, %v955
        %963 = vrot.lane.b32.xlu0 %v933, 1
        %v964 = vpop.permute.xlu0 %963
        %965 = vrot.lane.b32.xlu0 %v934, 1
        %v966 = vpop.permute.xlu0 %965
        %967 = vrot.lane.b32.xlu0 %v935, 1
        %v968 = vpop.permute.xlu0 %967
        %v969 = vsel %vm272, %v966, %v968
        %v970 = vsel %vm272, %v964, %v966
        %v971 = vsel %vm272, %v968, %v964
        %972 = vrot.lane.b32.xlu0 %v933, 127
        %v973 = vpop.permute.xlu0 %972
        %974 = vrot.lane.b32.xlu0 %v934, 127
        %v975 = vpop.permute.xlu0 %974
        %976 = vrot.lane.b32.xlu0 %v935, 127
        %v977 = vpop.permute.xlu0 %976
        %v978 = vsel %vm282, %v975, %v977
        %v979 = vsel %vm282, %v973, %v975
        %v980 = vsel %vm282, %v977, %v973
        %981 = vrot.lane.b32.xlu0 %v933, 111
        %v982 = vpop.permute.xlu0 %981
        %983 = vrot.lane.b32.xlu0 %v934, 111
        %v984 = vpop.permute.xlu0 %983
        %985 = vrot.lane.b32.xlu0 %v935, 111
        %v986 = vpop.permute.xlu0 %985
        %v987 = vsel %vm292, %v984, %v986
        %v988 = vsel %vm292, %v982, %v984
        %v989 = vsel %vm292, %v986, %v982
        %990 = vrot.lane.b32.xlu0 %v933, 110
        %v991 = vpop.permute.xlu0 %990
        %992 = vrot.lane.b32.xlu0 %v934, 110
        %v993 = vpop.permute.xlu0 %992
        %994 = vrot.lane.b32.xlu0 %v935, 110
        %v995 = vpop.permute.xlu0 %994
        %v996 = vsel %vm302, %v993, %v995
        %v997 = vsel %vm302, %v991, %v993
        %v998 = vsel %vm302, %v995, %v991
        %999 = vrot.lane.b32.xlu0 %v933, 109
        %v1000 = vpop.permute.xlu0 %999
        %1001 = vrot.lane.b32.xlu0 %v934, 109
        %v1002 = vpop.permute.xlu0 %1001
        %1003 = vrot.lane.b32.xlu0 %v935, 109
        %v1004 = vpop.permute.xlu0 %1003
        %v1005 = vsel %vm312, %v1002, %v1004
        %v1006 = vsel %vm312, %v1000, %v1002
        %v1007 = vsel %vm312, %v1004, %v1000
        %s1008 = scalar_lea.vmem %s1, 24
        %v1009 = vld [vmem:[%s1008] sm:$0xff]
        %s1010 = scalar_lea.vmem %s2, 24
        %v1011 = vld [vmem:[%s1010] sm:$0xff]
        %1013 = vset.pattern.permute.xlu0 0
        %1014 = vperm.xlu0 %1013, %v1011
        %v1015 = vpop.permute.xlu0 %1014
        %v1018 = vsel %vm323, %v1009, 0
        %1020 = vmatprep.subr.mxu0 %v943
        %1021 = vmatpush1.msra.mxu0 %v944
        %1022 = vmatprep.subr.mxu0 %v952
        %1023 = vmatpush1.msra.mxu0 %v953
        %1024 = vmatprep.subr.mxu0 %v961
        %1025 = vmatpush1.msra.mxu0 %v962
        %1026 = vmatprep.subr.mxu0 %v970
        %1027 = vmatpush1.msra.mxu0 %v971
        %1028 = vmatprep.subr.mxu0 %v934
        %1029 = vmatpush1.msra.mxu0 %v933
        %1030 = vmatprep.subr.mxu0 %v978
        %1031 = vmatpush1.msra.mxu0 %v979
        %1032 = vmatprep.subr.mxu0 %v987
        %1033 = vmatpush1.msra.mxu0 %v988
        %1034 = vmatprep.subr.mxu0 %v996
        %1035 = vmatpush1.msra.mxu0 %v997
        %1036 = vmatprep.subr.mxu0 %v1005
        %1037 = vmatpush1.msra.mxu0 %v1006
        %1038 = vmatprep.subr.mxu0 0.0
        %1039 = vmatpush1.msra.mxu0 0.0
        %1040 = vmatprep.subr.mxu0 0.0
        %1041 = vmatpush1.msra.mxu0 0.0
        %1042 = vmatprep.subr.mxu0 0.0
        %1043 = vmatpush1.msra.mxu0 0.0
        %1044 = vmatprep.subr.mxu0 0.0
        %1045 = vmatpush1.msra.mxu0 0.0
        %1046 = vmatprep.subr.mxu0 0.0
        %1047 = vmatpush1.msra.mxu0 0.0
        %1048 = vmatprep.subr.mxu0 0.0
        %1049 = vmatpush1.msra.mxu0 0.0
        %1050 = vmatprep.subr.mxu0 0.0
        %1051 = vmatpush1.msra.mxu0 0.0
        %1052 = vmatprep.subr.mxu0 0.0
        %1053 = vmatpush1.msra.mxu0 0.0
        %1054 = vmatprep.subr.mxu0 0.0
        %1055 = vmatpush1.msra.mxu0 0.0
        %1056 = vmatprep.subr.mxu0 0.0
        %1057 = vmatpush1.msra.mxu0 0.0
        %1058 = vmatprep.subr.mxu0 0.0
        %1059 = vmatpush1.msra.mxu0 0.0
        %1060 = vmatprep.subr.mxu0 0.0
        %1061 = vmatpush1.msra.mxu0 0.0
        %1062 = vmatprep.subr.mxu0 0.0
        %1063 = vmatpush1.msra.mxu0 0.0
        %1064 = vmatprep.subr.mxu0 0.0
        %1065 = vmatpush1.msra.mxu0 0.0
        %1066 = vmatprep.subr.mxu0 0.0
        %1067 = vmatpush1.msra.mxu0 0.0
        %1068 = vmatprep.subr.mxu0 0.0
        %1069 = vmatpush1.msra.mxu0 0.0
        %1070 = vmatprep.subr.mxu0 0.0
        %1071 = vmatpush1.msra.mxu0 0.0
        %1072 = vmatprep.subr.mxu0 0.0
        %1073 = vmatpush1.msra.mxu0 0.0
        %1074 = vmatprep.subr.mxu0 0.0
        %1075 = vmatpush1.msra.mxu0 0.0
        %1076 = vmatprep.subr.mxu0 0.0
        %1077 = vmatpush1.msra.mxu0 0.0
        %1078 = vmatprep.subr.mxu0 0.0
        %1079 = vmatpush1.msra.mxu0 0.0
        %1080 = vmatprep.subr.mxu0 0.0
        %1081 = vmatpush1.msra.mxu0 0.0
        %1082 = vmatprep.subr.mxu0 0.0
        %1083 = vmatpush1.msra.mxu0 0.0
        %1084 = vmatprep.mubr.f32.mxu0 0.0
        %1085 = vmatmul.mubr.f32.gmra.mrb[0].mxu0 %v1018
        %v1086 = vpop.f32.mrb[0].mxu0
        %v1087 = vadd.f32 %v1015, %v1086
        %v1088 = vpop.f32.mrb[0].mxu0
        %v1089 = vadd.f32 %v1015, %v1088
        %1090 = vdwg.mxu0
        %1091 = vmatprep.subr.mxu0 0.0
        %1092 = vmatpush1.msra.mxu0 %v942
        %1093 = vmatprep.subr.mxu0 0.0
        %1094 = vmatpush1.msra.mxu0 %v951
        %1095 = vmatprep.subr.mxu0 0.0
        %1096 = vmatpush1.msra.mxu0 %v960
        %1097 = vmatprep.subr.mxu0 0.0
        %1098 = vmatpush1.msra.mxu0 %v969
        %1099 = vmatprep.subr.mxu0 0.0
        %1100 = vmatpush1.msra.mxu0 %v935
        %1101 = vmatprep.subr.mxu0 0.0
        %1102 = vmatpush1.msra.mxu0 %v980
        %1103 = vmatprep.subr.mxu0 0.0
        %1104 = vmatpush1.msra.mxu0 %v989
        %1105 = vmatprep.subr.mxu0 0.0
        %1106 = vmatpush1.msra.mxu0 %v998
        %1107 = vmatprep.subr.mxu0 0.0
        %1108 = vmatpush1.msra.mxu0 %v1007
        %1109 = vmatprep.subr.mxu0 0.0
        %1110 = vmatpush1.msra.mxu0 0.0
        %1111 = vmatprep.subr.mxu0 0.0
        %1112 = vmatpush1.msra.mxu0 0.0
        %1113 = vmatprep.subr.mxu0 0.0
        %1114 = vmatpush1.msra.mxu0 0.0
        %1115 = vmatprep.subr.mxu0 0.0
        %1116 = vmatpush1.msra.mxu0 0.0
        %1117 = vmatprep.subr.mxu0 0.0
        %1118 = vmatpush1.msra.mxu0 0.0
        %1119 = vmatprep.subr.mxu0 0.0
        %1120 = vmatpush1.msra.mxu0 0.0
        %1121 = vmatprep.subr.mxu0 0.0
        %1122 = vmatpush1.msra.mxu0 0.0
        %1123 = vmatprep.subr.mxu0 0.0
        %1124 = vmatpush1.msra.mxu0 0.0
        %1125 = vmatprep.subr.mxu0 0.0
        %1126 = vmatpush1.msra.mxu0 0.0
        %1127 = vmatprep.subr.mxu0 0.0
        %1128 = vmatpush1.msra.mxu0 0.0
        %1129 = vmatprep.subr.mxu0 0.0
        %1130 = vmatpush1.msra.mxu0 0.0
        %1131 = vmatprep.subr.mxu0 0.0
        %1132 = vmatpush1.msra.mxu0 0.0
        %1133 = vmatprep.subr.mxu0 0.0
        %1134 = vmatpush1.msra.mxu0 0.0
        %1135 = vmatprep.subr.mxu0 0.0
        %1136 = vmatpush1.msra.mxu0 0.0
        %1137 = vmatprep.subr.mxu0 0.0
        %1138 = vmatpush1.msra.mxu0 0.0
        %1139 = vmatprep.subr.mxu0 0.0
        %1140 = vmatpush1.msra.mxu0 0.0
        %1141 = vmatprep.subr.mxu0 0.0
        %1142 = vmatpush1.msra.mxu0 0.0
        %1143 = vmatprep.subr.mxu0 0.0
        %1144 = vmatpush1.msra.mxu0 0.0
        %1145 = vmatprep.subr.mxu0 0.0
        %1146 = vmatpush1.msra.mxu0 0.0
        %1147 = vmatprep.subr.mxu0 0.0
        %1148 = vmatpush1.msra.mxu0 0.0
        %1149 = vmatprep.subr.mxu0 0.0
        %1150 = vmatpush1.msra.mxu0 0.0
        %1151 = vmatprep.subr.mxu0 0.0
        %1152 = vmatpush1.msra.mxu0 0.0
        %1153 = vmatprep.subr.mxu0 0.0
        %1154 = vmatpush1.msra.mxu0 0.0
        %1155 = vmatprep.mubr.f32.mxu0 0.0
        %1156 = vmatmul.mubr.f32.gmra.mrb[0].mxu0 %v1018
        %v1157 = vpop.f32.mrb[0].mxu0
        %v1158 = vadd.f32 %v1015, %v1157
        %v1159 = vpop.f32.mrb[0].mxu0
        %1160 = vdwg.mxu0
        %v1161 = vmax.f32 %v1087, 0.0
        %v1162 = vmax.f32 %v1089, 0.0
        %v1163 = vmax.f32 %v1158, 0.0
        %v1164 = vmul.f32 %v1161, %v219
        %v1165 = vmul.f32 %v1162, %v223
        %v1166 = vmul.f32 %v1163, %v227
        %1167 = vrot.lane.b32.xlu0 %v1164, 19
        %v1168 = vpop.permute.xlu0 %1167
        %1169 = vrot.lane.b32.xlu0 %v1165, 19
        %v1170 = vpop.permute.xlu0 %1169
        %1171 = vrot.lane.b32.xlu0 %v1166, 19
        %v1172 = vpop.permute.xlu0 %1171
        %v1173 = vsel %vm242, %v1170, %v1172
        %v1174 = vsel %vm242, %v1168, %v1170
        %v1175 = vsel %vm242, %v1172, %v1168
        %1176 = vrot.lane.b32.xlu0 %v1164, 18
        %v1177 = vpop.permute.xlu0 %1176
        %1178 = vrot.lane.b32.xlu0 %v1165, 18
        %v1179 = vpop.permute.xlu0 %1178
        %1180 = vrot.lane.b32.xlu0 %v1166, 18
        %v1181 = vpop.permute.xlu0 %1180
        %v1182 = vsel %vm252, %v1179, %v1181
        %v1183 = vsel %vm252, %v1177, %v1179
        %v1184 = vsel %vm252, %v1181, %v1177
        %1185 = vrot.lane.b32.xlu0 %v1164, 17
        %v1186 = vpop.permute.xlu0 %1185
        %1187 = vrot.lane.b32.xlu0 %v1165, 17
        %v1188 = vpop.permute.xlu0 %1187
        %1189 = vrot.lane.b32.xlu0 %v1166, 17
        %v1190 = vpop.permute.xlu0 %1189
        %v1191 = vsel %vm262, %v1188, %v1190
        %v1192 = vsel %vm262, %v1186, %v1188
        %v1193 = vsel %vm262, %v1190, %v1186
        %1194 = vrot.lane.b32.xlu0 %v1164, 1
        %v1195 = vpop.permute.xlu0 %1194
        %1196 = vrot.lane.b32.xlu0 %v1165, 1
        %v1197 = vpop.permute.xlu0 %1196
        %1198 = vrot.lane.b32.xlu0 %v1166, 1
        %v1199 = vpop.permute.xlu0 %1198
        %v1200 = vsel %vm272, %v1197, %v1199
        %v1201 = vsel %vm272, %v1195, %v1197
        %v1202 = vsel %vm272, %v1199, %v1195
        %1203 = vrot.lane.b32.xlu0 %v1164, 127
        %v1204 = vpop.permute.xlu0 %1203
        %1205 = vrot.lane.b32.xlu0 %v1165, 127
        %v1206 = vpop.permute.xlu0 %1205
        %1207 = vrot.lane.b32.xlu0 %v1166, 127
        %v1208 = vpop.permute.xlu0 %1207
        %v1209 = vsel %vm282, %v1206, %v1208
        %v1210 = vsel %vm282, %v1204, %v1206
        %v1211 = vsel %vm282, %v1208, %v1204
        %1212 = vrot.lane.b32.xlu0 %v1164, 111
        %v1213 = vpop.permute.xlu0 %1212
        %1214 = vrot.lane.b32.xlu0 %v1165, 111
        %v1215 = vpop.permute.xlu0 %1214
        %1216 = vrot.lane.b32.xlu0 %v1166, 111
        %v1217 = vpop.permute.xlu0 %1216
        %v1218 = vsel %vm292, %v1215, %v1217
        %v1219 = vsel %vm292, %v1213, %v1215
        %v1220 = vsel %vm292, %v1217, %v1213
        %1221 = vrot.lane.b32.xlu0 %v1164, 110
        %v1222 = vpop.permute.xlu0 %1221
        %1223 = vrot.lane.b32.xlu0 %v1165, 110
        %v1224 = vpop.permute.xlu0 %1223
        %1225 = vrot.lane.b32.xlu0 %v1166, 110
        %v1226 = vpop.permute.xlu0 %1225
        %v1227 = vsel %vm302, %v1224, %v1226
        %v1228 = vsel %vm302, %v1222, %v1224
        %v1229 = vsel %vm302, %v1226, %v1222
        %1230 = vrot.lane.b32.xlu0 %v1164, 109
        %v1231 = vpop.permute.xlu0 %1230
        %1232 = vrot.lane.b32.xlu0 %v1165, 109
        %v1233 = vpop.permute.xlu0 %1232
        %1234 = vrot.lane.b32.xlu0 %v1166, 109
        %v1235 = vpop.permute.xlu0 %1234
        %v1236 = vsel %vm312, %v1233, %v1235
        %v1237 = vsel %vm312, %v1231, %v1233
        %v1238 = vsel %vm312, %v1235, %v1231
        %s1239 = scalar_lea.vmem %s1, 32
        %v1240 = vld [vmem:[%s1239] sm:$0xff]
        %s1241 = scalar_lea.vmem %s2, 32
        %v1242 = vld [vmem:[%s1241] sm:$0xff]
        %1244 = vset.pattern.permute.xlu0 0
        %1245 = vperm.xlu0 %1244, %v1242
        %v1246 = vpop.permute.xlu0 %1245
        %v1249 = vsel %vm323, %v1240, 0
        %1251 = vmatprep.subr.mxu0 %v1174
        %1252 = vmatpush1.msra.mxu0 %v1175
        %1253 = vmatprep.subr.mxu0 %v1183
        %1254 = vmatpush1.msra.mxu0 %v1184
        %1255 = vmatprep.subr.mxu0 %v1192
        %1256 = vmatpush1.msra.mxu0 %v1193
        %1257 = vmatprep.subr.mxu0 %v1201
        %1258 = vmatpush1.msra.mxu0 %v1202
        %1259 = vmatprep.subr.mxu0 %v1165
        %1260 = vmatpush1.msra.mxu0 %v1164
        %1261 = vmatprep.subr.mxu0 %v1209
        %1262 = vmatpush1.msra.mxu0 %v1210
        %1263 = vmatprep.subr.mxu0 %v1218
        %1264 = vmatpush1.msra.mxu0 %v1219
        %1265 = vmatprep.subr.mxu0 %v1227
        %1266 = vmatpush1.msra.mxu0 %v1228
        %1267 = vmatprep.subr.mxu0 %v1236
        %1268 = vmatpush1.msra.mxu0 %v1237
        %1269 = vmatprep.subr.mxu0 0.0
        %1270 = vmatpush1.msra.mxu0 0.0
        %1271 = vmatprep.subr.mxu0 0.0
        %1272 = vmatpush1.msra.mxu0 0.0
        %1273 = vmatprep.subr.mxu0 0.0
        %1274 = vmatpush1.msra.mxu0 0.0
        %1275 = vmatprep.subr.mxu0 0.0
        %1276 = vmatpush1.msra.mxu0 0.0
        %1277 = vmatprep.subr.mxu0 0.0
        %1278 = vmatpush1.msra.mxu0 0.0
        %1279 = vmatprep.subr.mxu0 0.0
        %1280 = vmatpush1.msra.mxu0 0.0
        %1281 = vmatprep.subr.mxu0 0.0
        %1282 = vmatpush1.msra.mxu0 0.0
        %1283 = vmatprep.subr.mxu0 0.0
        %1284 = vmatpush1.msra.mxu0 0.0
        %1285 = vmatprep.subr.mxu0 0.0
        %1286 = vmatpush1.msra.mxu0 0.0
        %1287 = vmatprep.subr.mxu0 0.0
        %1288 = vmatpush1.msra.mxu0 0.0
        %1289 = vmatprep.subr.mxu0 0.0
        %1290 = vmatpush1.msra.mxu0 0.0
        %1291 = vmatprep.subr.mxu0 0.0
        %1292 = vmatpush1.msra.mxu0 0.0
        %1293 = vmatprep.subr.mxu0 0.0
        %1294 = vmatpush1.msra.mxu0 0.0
        %1295 = vmatprep.subr.mxu0 0.0
        %1296 = vmatpush1.msra.mxu0 0.0
        %1297 = vmatprep.subr.mxu0 0.0
        %1298 = vmatpush1.msra.mxu0 0.0
        %1299 = vmatprep.subr.mxu0 0.0
        %1300 = vmatpush1.msra.mxu0 0.0
        %1301 = vmatprep.subr.mxu0 0.0
        %1302 = vmatpush1.msra.mxu0 0.0
        %1303 = vmatprep.subr.mxu0 0.0
        %1304 = vmatpush1.msra.mxu0 0.0
        %1305 = vmatprep.subr.mxu0 0.0
        %1306 = vmatpush1.msra.mxu0 0.0
        %1307 = vmatprep.subr.mxu0 0.0
        %1308 = vmatpush1.msra.mxu0 0.0
        %1309 = vmatprep.subr.mxu0 0.0
        %1310 = vmatpush1.msra.mxu0 0.0
        %1311 = vmatprep.subr.mxu0 0.0
        %1312 = vmatpush1.msra.mxu0 0.0
        %1313 = vmatprep.subr.mxu0 0.0
        %1314 = vmatpush1.msra.mxu0 0.0
        %1315 = vmatprep.mubr.f32.mxu0 0.0
        %1316 = vmatmul.mubr.f32.gmra.mrb[0].mxu0 %v1249
        %v1317 = vpop.f32.mrb[0].mxu0
        %v1318 = vadd.f32 %v1246, %v1317
        %v1319 = vpop.f32.mrb[0].mxu0
        %v1320 = vadd.f32 %v1246, %v1319
        %1321 = vdwg.mxu0
        %1322 = vmatprep.subr.mxu0 0.0
        %1323 = vmatpush1.msra.mxu0 %v1173
        %1324 = vmatprep.subr.mxu0 0.0
        %1325 = vmatpush1.msra.mxu0 %v1182
        %1326 = vmatprep.subr.mxu0 0.0
        %1327 = vmatpush1.msra.mxu0 %v1191
        %1328 = vmatprep.subr.mxu0 0.0
        %1329 = vmatpush1.msra.mxu0 %v1200
        %1330 = vmatprep.subr.mxu0 0.0
        %1331 = vmatpush1.msra.mxu0 %v1166
        %1332 = vmatprep.subr.mxu0 0.0
        %1333 = vmatpush1.msra.mxu0 %v1211
        %1334 = vmatprep.subr.mxu0 0.0
        %1335 = vmatpush1.msra.mxu0 %v1220
        %1336 = vmatprep.subr.mxu0 0.0
        %1337 = vmatpush1.msra.mxu0 %v1229
        %1338 = vmatprep.subr.mxu0 0.0
        %1339 = vmatpush1.msra.mxu0 %v1238
        %1340 = vmatprep.subr.mxu0 0.0
        %1341 = vmatpush1.msra.mxu0 0.0
        %1342 = vmatprep.subr.mxu0 0.0
        %1343 = vmatpush1.msra.mxu0 0.0
        %1344 = vmatprep.subr.mxu0 0.0
        %1345 = vmatpush1.msra.mxu0 0.0
        %1346 = vmatprep.subr.mxu0 0.0
        %1347 = vmatpush1.msra.mxu0 0.0
        %1348 = vmatprep.subr.mxu0 0.0
        %1349 = vmatpush1.msra.mxu0 0.0
        %1350 = vmatprep.subr.mxu0 0.0
        %1351 = vmatpush1.msra.mxu0 0.0
        %1352 = vmatprep.subr.mxu0 0.0
        %1353 = vmatpush1.msra.mxu0 0.0
        %1354 = vmatprep.subr.mxu0 0.0
        %1355 = vmatpush1.msra.mxu0 0.0
        %1356 = vmatprep.subr.mxu0 0.0
        %1357 = vmatpush1.msra.mxu0 0.0
        %1358 = vmatprep.subr.mxu0 0.0
        %1359 = vmatpush1.msra.mxu0 0.0
        %1360 = vmatprep.subr.mxu0 0.0
        %1361 = vmatpush1.msra.mxu0 0.0
        %1362 = vmatprep.subr.mxu0 0.0
        %1363 = vmatpush1.msra.mxu0 0.0
        %1364 = vmatprep.subr.mxu0 0.0
        %1365 = vmatpush1.msra.mxu0 0.0
        %1366 = vmatprep.subr.mxu0 0.0
        %1367 = vmatpush1.msra.mxu0 0.0
        %1368 = vmatprep.subr.mxu0 0.0
        %1369 = vmatpush1.msra.mxu0 0.0
        %1370 = vmatprep.subr.mxu0 0.0
        %1371 = vmatpush1.msra.mxu0 0.0
        %1372 = vmatprep.subr.mxu0 0.0
        %1373 = vmatpush1.msra.mxu0 0.0
        %1374 = vmatprep.subr.mxu0 0.0
        %1375 = vmatpush1.msra.mxu0 0.0
        %1376 = vmatprep.subr.mxu0 0.0
        %1377 = vmatpush1.msra.mxu0 0.0
        %1378 = vmatprep.subr.mxu0 0.0
        %1379 = vmatpush1.msra.mxu0 0.0
        %1380 = vmatprep.subr.mxu0 0.0
        %1381 = vmatpush1.msra.mxu0 0.0
        %1382 = vmatprep.subr.mxu0 0.0
        %1383 = vmatpush1.msra.mxu0 0.0
        %1384 = vmatprep.subr.mxu0 0.0
        %1385 = vmatpush1.msra.mxu0 0.0
        %1386 = vmatprep.mubr.f32.mxu0 0.0
        %1387 = vmatmul.mubr.f32.gmra.mrb[0].mxu0 %v1249
        %v1388 = vpop.f32.mrb[0].mxu0
        %v1389 = vadd.f32 %v1246, %v1388
        %v1390 = vpop.f32.mrb[0].mxu0
        %1391 = vdwg.mxu0
        %v1392 = vmax.f32 %v1318, 0.0
        %v1393 = vmax.f32 %v1320, 0.0
        %v1394 = vmax.f32 %v1389, 0.0
        %v1395 = vmul.f32 %v1392, %v219
        %v1396 = vmul.f32 %v1393, %v223
        %v1397 = vmul.f32 %v1394, %v227
        %1398 = vrot.lane.b32.xlu0 %v1395, 19
        %v1399 = vpop.permute.xlu0 %1398
        %1400 = vrot.lane.b32.xlu0 %v1396, 19
        %v1401 = vpop.permute.xlu0 %1400
        %1402 = vrot.lane.b32.xlu0 %v1397, 19
        %v1403 = vpop.permute.xlu0 %1402
        %v1404 = vsel %vm242, %v1401, %v1403
        %v1405 = vsel %vm242, %v1399, %v1401
        %v1406 = vsel %vm242, %v1403, %v1399
        %1407 = vrot.lane.b32.xlu0 %v1395, 18
        %v1408 = vpop.permute.xlu0 %1407
        %1409 = vrot.lane.b32.xlu0 %v1396, 18
        %v1410 = vpop.permute.xlu0 %1409
        %1411 = vrot.lane.b32.xlu0 %v1397, 18
        %v1412 = vpop.permute.xlu0 %1411
        %v1413 = vsel %vm252, %v1410, %v1412
        %v1414 = vsel %vm252, %v1408, %v1410
        %v1415 = vsel %vm252, %v1412, %v1408
        %1416 = vrot.lane.b32.xlu0 %v1395, 17
        %v1417 = vpop.permute.xlu0 %1416
        %1418 = vrot.lane.b32.xlu0 %v1396, 17
        %v1419 = vpop.permute.xlu0 %1418
        %1420 = vrot.lane.b32.xlu0 %v1397, 17
        %v1421 = vpop.permute.xlu0 %1420
        %v1422 = vsel %vm262, %v1419, %v1421
        %v1423 = vsel %vm262, %v1417, %v1419
        %v1424 = vsel %vm262, %v1421, %v1417
        %1425 = vrot.lane.b32.xlu0 %v1395, 1
        %v1426 = vpop.permute.xlu0 %1425
        %1427 = vrot.lane.b32.xlu0 %v1396, 1
        %v1428 = vpop.permute.xlu0 %1427
        %1429 = vrot.lane.b32.xlu0 %v1397, 1
        %v1430 = vpop.permute.xlu0 %1429
        %v1431 = vsel %vm272, %v1428, %v1430
        %v1432 = vsel %vm272, %v1426, %v1428
        %v1433 = vsel %vm272, %v1430, %v1426
        %1434 = vrot.lane.b32.xlu0 %v1395, 127
        %v1435 = vpop.permute.xlu0 %1434
        %1436 = vrot.lane.b32.xlu0 %v1396, 127
        %v1437 = vpop.permute.xlu0 %1436
        %1438 = vrot.lane.b32.xlu0 %v1397, 127
        %v1439 = vpop.permute.xlu0 %1438
        %v1440 = vsel %vm282, %v1437, %v1439
        %v1441 = vsel %vm282, %v1435, %v1437
        %v1442 = vsel %vm282, %v1439, %v1435
        %1443 = vrot.lane.b32.xlu0 %v1395, 111
        %v1444 = vpop.permute.xlu0 %1443
        %1445 = vrot.lane.b32.xlu0 %v1396, 111
        %v1446 = vpop.permute.xlu0 %1445
        %1447 = vrot.lane.b32.xlu0 %v1397, 111
        %v1448 = vpop.permute.xlu0 %1447
        %v1449 = vsel %vm292, %v1446, %v1448
        %v1450 = vsel %vm292, %v1444, %v1446
        %v1451 = vsel %vm292, %v1448, %v1444
        %1452 = vrot.lane.b32.xlu0 %v1395, 110
        %v1453 = vpop.permute.xlu0 %1452
        %1454 = vrot.lane.b32.xlu0 %v1396, 110
        %v1455 = vpop.permute.xlu0 %1454
        %1456 = vrot.lane.b32.xlu0 %v1397, 110
        %v1457 = vpop.permute.xlu0 %1456
        %v1458 = vsel %vm302, %v1455, %v1457
        %v1459 = vsel %vm302, %v1453, %v1455
        %v1460 = vsel %vm302, %v1457, %v1453
        %1461 = vrot.lane.b32.xlu0 %v1395, 109
        %v1462 = vpop.permute.xlu0 %1461
        %1463 = vrot.lane.b32.xlu0 %v1396, 109
        %v1464 = vpop.permute.xlu0 %1463
        %1465 = vrot.lane.b32.xlu0 %v1397, 109
        %v1466 = vpop.permute.xlu0 %1465
        %v1467 = vsel %vm312, %v1464, %v1466
        %v1468 = vsel %vm312, %v1462, %v1464
        %v1469 = vsel %vm312, %v1466, %v1462
        %s1470 = scalar_lea.vmem %s1, 40
        %v1471 = vld [vmem:[%s1470] sm:$0xff]
        %s1472 = scalar_lea.vmem %s2, 40
        %v1473 = vld [vmem:[%s1472] sm:$0xff]
        %1475 = vset.pattern.permute.xlu0 0
        %1476 = vperm.xlu0 %1475, %v1473
        %v1477 = vpop.permute.xlu0 %1476
        %v1480 = vsel %vm323, %v1471, 0
        %1482 = vmatprep.subr.mxu0 %v1405
        %1483 = vmatpush1.msra.mxu0 %v1406
        %1484 = vmatprep.subr.mxu0 %v1414
        %1485 = vmatpush1.msra.mxu0 %v1415
        %1486 = vmatprep.subr.mxu0 %v1423
        %1487 = vmatpush1.msra.mxu0 %v1424
        %1488 = vmatprep.subr.mxu0 %v1432
        %1489 = vmatpush1.msra.mxu0 %v1433
        %1490 = vmatprep.subr.mxu0 %v1396
        %1491 = vmatpush1.msra.mxu0 %v1395
        %1492 = vmatprep.subr.mxu0 %v1440
        %1493 = vmatpush1.msra.mxu0 %v1441
        %1494 = vmatprep.subr.mxu0 %v1449
        %1495 = vmatpush1.msra.mxu0 %v1450
        %1496 = vmatprep.subr.mxu0 %v1458
        %1497 = vmatpush1.msra.mxu0 %v1459
        %1498 = vmatprep.subr.mxu0 %v1467
        %1499 = vmatpush1.msra.mxu0 %v1468
        %1500 = vmatprep.subr.mxu0 0.0
        %1501 = vmatpush1.msra.mxu0 0.0
        %1502 = vmatprep.subr.mxu0 0.0
        %1503 = vmatpush1.msra.mxu0 0.0
        %1504 = vmatprep.subr.mxu0 0.0
        %1505 = vmatpush1.msra.mxu0 0.0
        %1506 = vmatprep.subr.mxu0 0.0
        %1507 = vmatpush1.msra.mxu0 0.0
        %1508 = vmatprep.subr.mxu0 0.0
        %1509 = vmatpush1.msra.mxu0 0.0
        %1510 = vmatprep.subr.mxu0 0.0
        %1511 = vmatpush1.msra.mxu0 0.0
        %1512 = vmatprep.subr.mxu0 0.0
        %1513 = vmatpush1.msra.mxu0 0.0
        %1514 = vmatprep.subr.mxu0 0.0
        %1515 = vmatpush1.msra.mxu0 0.0
        %1516 = vmatprep.subr.mxu0 0.0
        %1517 = vmatpush1.msra.mxu0 0.0
        %1518 = vmatprep.subr.mxu0 0.0
        %1519 = vmatpush1.msra.mxu0 0.0
        %1520 = vmatprep.subr.mxu0 0.0
        %1521 = vmatpush1.msra.mxu0 0.0
        %1522 = vmatprep.subr.mxu0 0.0
        %1523 = vmatpush1.msra.mxu0 0.0
        %1524 = vmatprep.subr.mxu0 0.0
        %1525 = vmatpush1.msra.mxu0 0.0
        %1526 = vmatprep.subr.mxu0 0.0
        %1527 = vmatpush1.msra.mxu0 0.0
        %1528 = vmatprep.subr.mxu0 0.0
        %1529 = vmatpush1.msra.mxu0 0.0
        %1530 = vmatprep.subr.mxu0 0.0
        %1531 = vmatpush1.msra.mxu0 0.0
        %1532 = vmatprep.subr.mxu0 0.0
        %1533 = vmatpush1.msra.mxu0 0.0
        %1534 = vmatprep.subr.mxu0 0.0
        %1535 = vmatpush1.msra.mxu0 0.0
        %1536 = vmatprep.subr.mxu0 0.0
        %1537 = vmatpush1.msra.mxu0 0.0
        %1538 = vmatprep.subr.mxu0 0.0
        %1539 = vmatpush1.msra.mxu0 0.0
        %1540 = vmatprep.subr.mxu0 0.0
        %1541 = vmatpush1.msra.mxu0 0.0
        %1542 = vmatprep.subr.mxu0 0.0
        %1543 = vmatpush1.msra.mxu0 0.0
        %1544 = vmatprep.subr.mxu0 0.0
        %1545 = vmatpush1.msra.mxu0 0.0
        %1546 = vmatprep.mubr.f32.mxu0 0.0
        %1547 = vmatmul.mubr.f32.gmra.mrb[0].mxu0 %v1480
        %v1548 = vpop.f32.mrb[0].mxu0
        %v1549 = vadd.f32 %v1477, %v1548
        %v1550 = vpop.f32.mrb[0].mxu0
        %v1551 = vadd.f32 %v1477, %v1550
        %1552 = vdwg.mxu0
        %1553 = vmatprep.subr.mxu0 0.0
        %1554 = vmatpush1.msra.mxu0 %v1404
        %1555 = vmatprep.subr.mxu0 0.0
        %1556 = vmatpush1.msra.mxu0 %v1413
        %1557 = vmatprep.subr.mxu0 0.0
        %1558 = vmatpush1.msra.mxu0 %v1422
        %1559 = vmatprep.subr.mxu0 0.0
        %1560 = vmatpush1.msra.mxu0 %v1431
        %1561 = vmatprep.subr.mxu0 0.0
        %1562 = vmatpush1.msra.mxu0 %v1397
        %1563 = vmatprep.subr.mxu0 0.0
        %1564 = vmatpush1.msra.mxu0 %v1442
        %1565 = vmatprep.subr.mxu0 0.0
        %1566 = vmatpush1.msra.mxu0 %v1451
        %1567 = vmatprep.subr.mxu0 0.0
        %1568 = vmatpush1.msra.mxu0 %v1460
        %1569 = vmatprep.subr.mxu0 0.0
        %1570 = vmatpush1.msra.mxu0 %v1469
        %1571 = vmatprep.subr.mxu0 0.0
        %1572 = vmatpush1.msra.mxu0 0.0
        %1573 = vmatprep.subr.mxu0 0.0
        %1574 = vmatpush1.msra.mxu0 0.0
        %1575 = vmatprep.subr.mxu0 0.0
        %1576 = vmatpush1.msra.mxu0 0.0
        %1577 = vmatprep.subr.mxu0 0.0
        %1578 = vmatpush1.msra.mxu0 0.0
        %1579 = vmatprep.subr.mxu0 0.0
        %1580 = vmatpush1.msra.mxu0 0.0
        %1581 = vmatprep.subr.mxu0 0.0
        %1582 = vmatpush1.msra.mxu0 0.0
        %1583 = vmatprep.subr.mxu0 0.0
        %1584 = vmatpush1.msra.mxu0 0.0
        %1585 = vmatprep.subr.mxu0 0.0
        %1586 = vmatpush1.msra.mxu0 0.0
        %1587 = vmatprep.subr.mxu0 0.0
        %1588 = vmatpush1.msra.mxu0 0.0
        %1589 = vmatprep.subr.mxu0 0.0
        %1590 = vmatpush1.msra.mxu0 0.0
        %1591 = vmatprep.subr.mxu0 0.0
        %1592 = vmatpush1.msra.mxu0 0.0
        %1593 = vmatprep.subr.mxu0 0.0
        %1594 = vmatpush1.msra.mxu0 0.0
        %1595 = vmatprep.subr.mxu0 0.0
        %1596 = vmatpush1.msra.mxu0 0.0
        %1597 = vmatprep.subr.mxu0 0.0
        %1598 = vmatpush1.msra.mxu0 0.0
        %1599 = vmatprep.subr.mxu0 0.0
        %1600 = vmatpush1.msra.mxu0 0.0
        %1601 = vmatprep.subr.mxu0 0.0
        %1602 = vmatpush1.msra.mxu0 0.0
        %1603 = vmatprep.subr.mxu0 0.0
        %1604 = vmatpush1.msra.mxu0 0.0
        %1605 = vmatprep.subr.mxu0 0.0
        %1606 = vmatpush1.msra.mxu0 0.0
        %1607 = vmatprep.subr.mxu0 0.0
        %1608 = vmatpush1.msra.mxu0 0.0
        %1609 = vmatprep.subr.mxu0 0.0
        %1610 = vmatpush1.msra.mxu0 0.0
        %1611 = vmatprep.subr.mxu0 0.0
        %1612 = vmatpush1.msra.mxu0 0.0
        %1613 = vmatprep.subr.mxu0 0.0
        %1614 = vmatpush1.msra.mxu0 0.0
        %1615 = vmatprep.subr.mxu0 0.0
        %1616 = vmatpush1.msra.mxu0 0.0
        %1617 = vmatprep.mubr.f32.mxu0 0.0
        %1618 = vmatmul.mubr.f32.gmra.mrb[0].mxu0 %v1480
        %v1619 = vpop.f32.mrb[0].mxu0
        %v1620 = vadd.f32 %v1477, %v1619
        %v1621 = vpop.f32.mrb[0].mxu0
        %1622 = vdwg.mxu0
        %v1623 = vmax.f32 %v1549, 0.0
        %v1624 = vmax.f32 %v1551, 0.0
        %v1625 = vmax.f32 %v1620, 0.0
        %v1626 = vmul.f32 %v1623, %v219
        %v1627 = vmul.f32 %v1624, %v223
        %v1628 = vmul.f32 %v1625, %v227
        %v1629 = vadd.f32 %v1626, %v933
        %v1630 = vadd.f32 %v1627, %v934
        %v1631 = vadd.f32 %v1628, %v935
        %1632 = vrot.lane.b32.xlu0 %v1629, 19
        %v1633 = vpop.permute.xlu0 %1632
        %1634 = vrot.lane.b32.xlu0 %v1630, 19
        %v1635 = vpop.permute.xlu0 %1634
        %1636 = vrot.lane.b32.xlu0 %v1631, 19
        %v1637 = vpop.permute.xlu0 %1636
        %v1638 = vsel %vm242, %v1635, %v1637
        %v1639 = vsel %vm242, %v1633, %v1635
        %v1640 = vsel %vm242, %v1637, %v1633
        %1641 = vrot.lane.b32.xlu0 %v1629, 18
        %v1642 = vpop.permute.xlu0 %1641
        %1643 = vrot.lane.b32.xlu0 %v1630, 18
        %v1644 = vpop.permute.xlu0 %1643
        %1645 = vrot.lane.b32.xlu0 %v1631, 18
        %v1646 = vpop.permute.xlu0 %1645
        %v1647 = vsel %vm252, %v1644, %v1646
        %v1648 = vsel %vm252, %v1642, %v1644
        %v1649 = vsel %vm252, %v1646, %v1642
        %1650 = vrot.lane.b32.xlu0 %v1629, 17
        %v1651 = vpop.permute.xlu0 %1650
        %1652 = vrot.lane.b32.xlu0 %v1630, 17
        %v1653 = vpop.permute.xlu0 %1652
        %1654 = vrot.lane.b32.xlu0 %v1631, 17
        %v1655 = vpop.permute.xlu0 %1654
        %v1656 = vsel %vm262, %v1653, %v1655
        %v1657 = vsel %vm262, %v1651, %v1653
        %v1658 = vsel %vm262, %v1655, %v1651
        %1659 = vrot.lane.b32.xlu0 %v1629, 1
        %v1660 = vpop.permute.xlu0 %1659
        %1661 = vrot.lane.b32.xlu0 %v1630, 1
        %v1662 = vpop.permute.xlu0 %1661
        %1663 = vrot.lane.b32.xlu0 %v1631, 1
        %v1664 = vpop.permute.xlu0 %1663
        %v1665 = vsel %vm272, %v1662, %v1664
        %v1666 = vsel %vm272, %v1660, %v1662
        %v1667 = vsel %vm272, %v1664, %v1660
        %1668 = vrot.lane.b32.xlu0 %v1629, 127
        %v1669 = vpop.permute.xlu0 %1668
        %1670 = vrot.lane.b32.xlu0 %v1630, 127
        %v1671 = vpop.permute.xlu0 %1670
        %1672 = vrot.lane.b32.xlu0 %v1631, 127
        %v1673 = vpop.permute.xlu0 %1672
        %v1674 = vsel %vm282, %v1671, %v1673
        %v1675 = vsel %vm282, %v1669, %v1671
        %v1676 = vsel %vm282, %v1673, %v1669
        %1677 = vrot.lane.b32.xlu0 %v1629, 111
        %v1678 = vpop.permute.xlu0 %1677
        %1679 = vrot.lane.b32.xlu0 %v1630, 111
        %v1680 = vpop.permute.xlu0 %1679
        %1681 = vrot.lane.b32.xlu0 %v1631, 111
        %v1682 = vpop.permute.xlu0 %1681
        %v1683 = vsel %vm292, %v1680, %v1682
        %v1684 = vsel %vm292, %v1678, %v1680
        %v1685 = vsel %vm292, %v1682, %v1678
        %1686 = vrot.lane.b32.xlu0 %v1629, 110
        %v1687 = vpop.permute.xlu0 %1686
        %1688 = vrot.lane.b32.xlu0 %v1630, 110
        %v1689 = vpop.permute.xlu0 %1688
        %1690 = vrot.lane.b32.xlu0 %v1631, 110
        %v1691 = vpop.permute.xlu0 %1690
        %v1692 = vsel %vm302, %v1689, %v1691
        %v1693 = vsel %vm302, %v1687, %v1689
        %v1694 = vsel %vm302, %v1691, %v1687
        %1695 = vrot.lane.b32.xlu0 %v1629, 109
        %v1696 = vpop.permute.xlu0 %1695
        %1697 = vrot.lane.b32.xlu0 %v1630, 109
        %v1698 = vpop.permute.xlu0 %1697
        %1699 = vrot.lane.b32.xlu0 %v1631, 109
        %v1700 = vpop.permute.xlu0 %1699
        %v1701 = vsel %vm312, %v1698, %v1700
        %v1702 = vsel %vm312, %v1696, %v1698
        %v1703 = vsel %vm312, %v1700, %v1696
        %s1704 = scalar_lea.vmem %s1, 48
        %v1705 = vld [vmem:[%s1704] sm:$0xff]
        %s1706 = scalar_lea.vmem %s2, 48
        %v1707 = vld [vmem:[%s1706] sm:$0xff]
        %1709 = vset.pattern.permute.xlu0 0
        %1710 = vperm.xlu0 %1709, %v1707
        %v1711 = vpop.permute.xlu0 %1710
        %v1714 = vsel %vm323, %v1705, 0
        %1716 = vmatprep.subr.mxu0 %v1639
        %1717 = vmatpush1.msra.mxu0 %v1640
        %1718 = vmatprep.subr.mxu0 %v1648
        %1719 = vmatpush1.msra.mxu0 %v1649
        %1720 = vmatprep.subr.mxu0 %v1657
        %1721 = vmatpush1.msra.mxu0 %v1658
        %1722 = vmatprep.subr.mxu0 %v1666
        %1723 = vmatpush1.msra.mxu0 %v1667
        %1724 = vmatprep.subr.mxu0 %v1630
        %1725 = vmatpush1.msra.mxu0 %v1629
        %1726 = vmatprep.subr.mxu0 %v1674
        %1727 = vmatpush1.msra.mxu0 %v1675
        %1728 = vmatprep.subr.mxu0 %v1683
        %1729 = vmatpush1.msra.mxu0 %v1684
        %1730 = vmatprep.subr.mxu0 %v1692
        %1731 = vmatpush1.msra.mxu0 %v1693
        %1732 = vmatprep.subr.mxu0 %v1701
        %1733 = vmatpush1.msra.mxu0 %v1702
        %1734 = vmatprep.subr.mxu0 0.0
        %1735 = vmatpush1.msra.mxu0 0.0
        %1736 = vmatprep.subr.mxu0 0.0
        %1737 = vmatpush1.msra.mxu0 0.0
        %1738 = vmatprep.subr.mxu0 0.0
        %1739 = vmatpush1.msra.mxu0 0.0
        %1740 = vmatprep.subr.mxu0 0.0
        %1741 = vmatpush1.msra.mxu0 0.0
        %1742 = vmatprep.subr.mxu0 0.0
        %1743 = vmatpush1.msra.mxu0 0.0
        %1744 = vmatprep.subr.mxu0 0.0
        %1745 = vmatpush1.msra.mxu0 0.0
        %1746 = vmatprep.subr.mxu0 0.0
        %1747 = vmatpush1.msra.mxu0 0.0
        %1748 = vmatprep.subr.mxu0 0.0
        %1749 = vmatpush1.msra.mxu0 0.0
        %1750 = vmatprep.subr.mxu0 0.0
        %1751 = vmatpush1.msra.mxu0 0.0
        %1752 = vmatprep.subr.mxu0 0.0
        %1753 = vmatpush1.msra.mxu0 0.0
        %1754 = vmatprep.subr.mxu0 0.0
        %1755 = vmatpush1.msra.mxu0 0.0
        %1756 = vmatprep.subr.mxu0 0.0
        %1757 = vmatpush1.msra.mxu0 0.0
        %1758 = vmatprep.subr.mxu0 0.0
        %1759 = vmatpush1.msra.mxu0 0.0
        %1760 = vmatprep.subr.mxu0 0.0
        %1761 = vmatpush1.msra.mxu0 0.0
        %1762 = vmatprep.subr.mxu0 0.0
        %1763 = vmatpush1.msra.mxu0 0.0
        %1764 = vmatprep.subr.mxu0 0.0
        %1765 = vmatpush1.msra.mxu0 0.0
        %1766 = vmatprep.subr.mxu0 0.0
        %1767 = vmatpush1.msra.mxu0 0.0
        %1768 = vmatprep.subr.mxu0 0.0
        %1769 = vmatpush1.msra.mxu0 0.0
        %1770 = vmatprep.subr.mxu0 0.0
        %1771 = vmatpush1.msra.mxu0 0.0
        %1772 = vmatprep.subr.mxu0 0.0
        %1773 = vmatpush1.msra.mxu0 0.0
        %1774 = vmatprep.subr.mxu0 0.0
        %1775 = vmatpush1.msra.mxu0 0.0
        %1776 = vmatprep.subr.mxu0 0.0
        %1777 = vmatpush1.msra.mxu0 0.0
        %1778 = vmatprep.subr.mxu0 0.0
        %1779 = vmatpush1.msra.mxu0 0.0
        %1780 = vmatprep.mubr.f32.mxu0 0.0
        %1781 = vmatmul.mubr.f32.gmra.mrb[0].mxu0 %v1714
        %v1782 = vpop.f32.mrb[0].mxu0
        %v1783 = vadd.f32 %v1711, %v1782
        %v1784 = vpop.f32.mrb[0].mxu0
        %v1785 = vadd.f32 %v1711, %v1784
        %1786 = vdwg.mxu0
        %1787 = vmatprep.subr.mxu0 0.0
        %1788 = vmatpush1.msra.mxu0 %v1638
        %1789 = vmatprep.subr.mxu0 0.0
        %1790 = vmatpush1.msra.mxu0 %v1647
        %1791 = vmatprep.subr.mxu0 0.0
        %1792 = vmatpush1.msra.mxu0 %v1656
        %1793 = vmatprep.subr.mxu0 0.0
        %1794 = vmatpush1.msra.mxu0 %v1665
        %1795 = vmatprep.subr.mxu0 0.0
        %1796 = vmatpush1.msra.mxu0 %v1631
        %1797 = vmatprep.subr.mxu0 0.0
        %1798 = vmatpush1.msra.mxu0 %v1676
        %1799 = vmatprep.subr.mxu0 0.0
        %1800 = vmatpush1.msra.mxu0 %v1685
        %1801 = vmatprep.subr.mxu0 0.0
        %1802 = vmatpush1.msra.mxu0 %v1694
        %1803 = vmatprep.subr.mxu0 0.0
        %1804 = vmatpush1.msra.mxu0 %v1703
        %1805 = vmatprep.subr.mxu0 0.0
        %1806 = vmatpush1.msra.mxu0 0.0
        %1807 = vmatprep.subr.mxu0 0.0
        %1808 = vmatpush1.msra.mxu0 0.0
        %1809 = vmatprep.subr.mxu0 0.0
        %1810 = vmatpush1.msra.mxu0 0.0
        %1811 = vmatprep.subr.mxu0 0.0
        %1812 = vmatpush1.msra.mxu0 0.0
        %1813 = vmatprep.subr.mxu0 0.0
        %1814 = vmatpush1.msra.mxu0 0.0
        %1815 = vmatprep.subr.mxu0 0.0
        %1816 = vmatpush1.msra.mxu0 0.0
        %1817 = vmatprep.subr.mxu0 0.0
        %1818 = vmatpush1.msra.mxu0 0.0
        %1819 = vmatprep.subr.mxu0 0.0
        %1820 = vmatpush1.msra.mxu0 0.0
        %1821 = vmatprep.subr.mxu0 0.0
        %1822 = vmatpush1.msra.mxu0 0.0
        %1823 = vmatprep.subr.mxu0 0.0
        %1824 = vmatpush1.msra.mxu0 0.0
        %1825 = vmatprep.subr.mxu0 0.0
        %1826 = vmatpush1.msra.mxu0 0.0
        %1827 = vmatprep.subr.mxu0 0.0
        %1828 = vmatpush1.msra.mxu0 0.0
        %1829 = vmatprep.subr.mxu0 0.0
        %1830 = vmatpush1.msra.mxu0 0.0
        %1831 = vmatprep.subr.mxu0 0.0
        %1832 = vmatpush1.msra.mxu0 0.0
        %1833 = vmatprep.subr.mxu0 0.0
        %1834 = vmatpush1.msra.mxu0 0.0
        %1835 = vmatprep.subr.mxu0 0.0
        %1836 = vmatpush1.msra.mxu0 0.0
        %1837 = vmatprep.subr.mxu0 0.0
        %1838 = vmatpush1.msra.mxu0 0.0
        %1839 = vmatprep.subr.mxu0 0.0
        %1840 = vmatpush1.msra.mxu0 0.0
        %1841 = vmatprep.subr.mxu0 0.0
        %1842 = vmatpush1.msra.mxu0 0.0
        %1843 = vmatprep.subr.mxu0 0.0
        %1844 = vmatpush1.msra.mxu0 0.0
        %1845 = vmatprep.subr.mxu0 0.0
        %1846 = vmatpush1.msra.mxu0 0.0
        %1847 = vmatprep.subr.mxu0 0.0
        %1848 = vmatpush1.msra.mxu0 0.0
        %1849 = vmatprep.subr.mxu0 0.0
        %1850 = vmatpush1.msra.mxu0 0.0
        %1851 = vmatprep.mubr.f32.mxu0 0.0
        %1852 = vmatmul.mubr.f32.gmra.mrb[0].mxu0 %v1714
        %v1853 = vpop.f32.mrb[0].mxu0
        %v1854 = vadd.f32 %v1711, %v1853
        %v1855 = vpop.f32.mrb[0].mxu0
        %1856 = vdwg.mxu0
        %v1857 = vmax.f32 %v1783, 0.0
        %v1858 = vmax.f32 %v1785, 0.0
        %v1859 = vmax.f32 %v1854, 0.0
        %v1860 = vmul.f32 %v1857, %v219
        %v1861 = vmul.f32 %v1858, %v223
        %v1862 = vmul.f32 %v1859, %v227
        %1863 = vrot.lane.b32.xlu0 %v1860, 19
        %v1864 = vpop.permute.xlu0 %1863
        %1865 = vrot.lane.b32.xlu0 %v1861, 19
        %v1866 = vpop.permute.xlu0 %1865
        %1867 = vrot.lane.b32.xlu0 %v1862, 19
        %v1868 = vpop.permute.xlu0 %1867
        %v1869 = vsel %vm242, %v1866, %v1868
        %v1870 = vsel %vm242, %v1864, %v1866
        %v1871 = vsel %vm242, %v1868, %v1864
        %1872 = vrot.lane.b32.xlu0 %v1860, 18
        %v1873 = vpop.permute.xlu0 %1872
        %1874 = vrot.lane.b32.xlu0 %v1861, 18
        %v1875 = vpop.permute.xlu0 %1874
        %1876 = vrot.lane.b32.xlu0 %v1862, 18
        %v1877 = vpop.permute.xlu0 %1876
        %v1878 = vsel %vm252, %v1875, %v1877
        %v1879 = vsel %vm252, %v1873, %v1875
        %v1880 = vsel %vm252, %v1877, %v1873
        %1881 = vrot.lane.b32.xlu0 %v1860, 17
        %v1882 = vpop.permute.xlu0 %1881
        %1883 = vrot.lane.b32.xlu0 %v1861, 17
        %v1884 = vpop.permute.xlu0 %1883
        %1885 = vrot.lane.b32.xlu0 %v1862, 17
        %v1886 = vpop.permute.xlu0 %1885
        %v1887 = vsel %vm262, %v1884, %v1886
        %v1888 = vsel %vm262, %v1882, %v1884
        %v1889 = vsel %vm262, %v1886, %v1882
        %1890 = vrot.lane.b32.xlu0 %v1860, 1
        %v1891 = vpop.permute.xlu0 %1890
        %1892 = vrot.lane.b32.xlu0 %v1861, 1
        %v1893 = vpop.permute.xlu0 %1892
        %1894 = vrot.lane.b32.xlu0 %v1862, 1
        %v1895 = vpop.permute.xlu0 %1894
        %v1896 = vsel %vm272, %v1893, %v1895
        %v1897 = vsel %vm272, %v1891, %v1893
        %v1898 = vsel %vm272, %v1895, %v1891
        %1899 = vrot.lane.b32.xlu0 %v1860, 127
        %v1900 = vpop.permute.xlu0 %1899
        %1901 = vrot.lane.b32.xlu0 %v1861, 127
        %v1902 = vpop.permute.xlu0 %1901
        %1903 = vrot.lane.b32.xlu0 %v1862, 127
        %v1904 = vpop.permute.xlu0 %1903
        %v1905 = vsel %vm282, %v1902, %v1904
        %v1906 = vsel %vm282, %v1900, %v1902
        %v1907 = vsel %vm282, %v1904, %v1900
        %1908 = vrot.lane.b32.xlu0 %v1860, 111
        %v1909 = vpop.permute.xlu0 %1908
        %1910 = vrot.lane.b32.xlu0 %v1861, 111
        %v1911 = vpop.permute.xlu0 %1910
        %1912 = vrot.lane.b32.xlu0 %v1862, 111
        %v1913 = vpop.permute.xlu0 %1912
        %v1914 = vsel %vm292, %v1911, %v1913
        %v1915 = vsel %vm292, %v1909, %v1911
        %v1916 = vsel %vm292, %v1913, %v1909
        %1917 = vrot.lane.b32.xlu0 %v1860, 110
        %v1918 = vpop.permute.xlu0 %1917
        %1919 = vrot.lane.b32.xlu0 %v1861, 110
        %v1920 = vpop.permute.xlu0 %1919
        %1921 = vrot.lane.b32.xlu0 %v1862, 110
        %v1922 = vpop.permute.xlu0 %1921
        %v1923 = vsel %vm302, %v1920, %v1922
        %v1924 = vsel %vm302, %v1918, %v1920
        %v1925 = vsel %vm302, %v1922, %v1918
        %1926 = vrot.lane.b32.xlu0 %v1860, 109
        %v1927 = vpop.permute.xlu0 %1926
        %1928 = vrot.lane.b32.xlu0 %v1861, 109
        %v1929 = vpop.permute.xlu0 %1928
        %1930 = vrot.lane.b32.xlu0 %v1862, 109
        %v1931 = vpop.permute.xlu0 %1930
        %v1932 = vsel %vm312, %v1929, %v1931
        %v1933 = vsel %vm312, %v1927, %v1929
        %v1934 = vsel %vm312, %v1931, %v1927
        %s1935 = scalar_lea.vmem %s1, 56
        %v1936 = vld [vmem:[%s1935] sm:$0xff]
        %s1937 = scalar_lea.vmem %s2, 56
        %v1938 = vld [vmem:[%s1937] sm:$0xff]
        %1940 = vset.pattern.permute.xlu0 0
        %1941 = vperm.xlu0 %1940, %v1938
        %v1942 = vpop.permute.xlu0 %1941
        %v1945 = vsel %vm323, %v1936, 0
        %1947 = vmatprep.subr.mxu0 %v1870
        %1948 = vmatpush1.msra.mxu0 %v1871
        %1949 = vmatprep.subr.mxu0 %v1879
        %1950 = vmatpush1.msra.mxu0 %v1880
        %1951 = vmatprep.subr.mxu0 %v1888
        %1952 = vmatpush1.msra.mxu0 %v1889
        %1953 = vmatprep.subr.mxu0 %v1897
        %1954 = vmatpush1.msra.mxu0 %v1898
        %1955 = vmatprep.subr.mxu0 %v1861
        %1956 = vmatpush1.msra.mxu0 %v1860
        %1957 = vmatprep.subr.mxu0 %v1905
        %1958 = vmatpush1.msra.mxu0 %v1906
        %1959 = vmatprep.subr.mxu0 %v1914
        %1960 = vmatpush1.msra.mxu0 %v1915
        %1961 = vmatprep.subr.mxu0 %v1923
        %1962 = vmatpush1.msra.mxu0 %v1924
        %1963 = vmatprep.subr.mxu0 %v1932
        %1964 = vmatpush1.msra.mxu0 %v1933
        %1965 = vmatprep.subr.mxu0 0.0
        %1966 = vmatpush1.msra.mxu0 0.0
        %1967 = vmatprep.subr.mxu0 0.0
        %1968 = vmatpush1.msra.mxu0 0.0
        %1969 = vmatprep.subr.mxu0 0.0
        %1970 = vmatpush1.msra.mxu0 0.0
        %1971 = vmatprep.subr.mxu0 0.0
        %1972 = vmatpush1.msra.mxu0 0.0
        %1973 = vmatprep.subr.mxu0 0.0
        %1974 = vmatpush1.msra.mxu0 0.0
        %1975 = vmatprep.subr.mxu0 0.0
        %1976 = vmatpush1.msra.mxu0 0.0
        %1977 = vmatprep.subr.mxu0 0.0
        %1978 = vmatpush1.msra.mxu0 0.0
        %1979 = vmatprep.subr.mxu0 0.0
        %1980 = vmatpush1.msra.mxu0 0.0
        %1981 = vmatprep.subr.mxu0 0.0
        %1982 = vmatpush1.msra.mxu0 0.0
        %1983 = vmatprep.subr.mxu0 0.0
        %1984 = vmatpush1.msra.mxu0 0.0
        %1985 = vmatprep.subr.mxu0 0.0
        %1986 = vmatpush1.msra.mxu0 0.0
        %1987 = vmatprep.subr.mxu0 0.0
        %1988 = vmatpush1.msra.mxu0 0.0
        %1989 = vmatprep.subr.mxu0 0.0
        %1990 = vmatpush1.msra.mxu0 0.0
        %1991 = vmatprep.subr.mxu0 0.0
        %1992 = vmatpush1.msra.mxu0 0.0
        %1993 = vmatprep.subr.mxu0 0.0
        %1994 = vmatpush1.msra.mxu0 0.0
        %1995 = vmatprep.subr.mxu0 0.0
        %1996 = vmatpush1.msra.mxu0 0.0
        %1997 = vmatprep.subr.mxu0 0.0
        %1998 = vmatpush1.msra.mxu0 0.0
        %1999 = vmatprep.subr.mxu0 0.0
        %2000 = vmatpush1.msra.mxu0 0.0
        %2001 = vmatprep.subr.mxu0 0.0
        %2002 = vmatpush1.msra.mxu0 0.0
        %2003 = vmatprep.subr.mxu0 0.0
        %2004 = vmatpush1.msra.mxu0 0.0
        %2005 = vmatprep.subr.mxu0 0.0
        %2006 = vmatpush1.msra.mxu0 0.0
        %2007 = vmatprep.subr.mxu0 0.0
        %2008 = vmatpush1.msra.mxu0 0.0
        %2009 = vmatprep.subr.mxu0 0.0
        %2010 = vmatpush1.msra.mxu0 0.0
        %2011 = vmatprep.mubr.f32.mxu0 0.0
        %2012 = vmatmul.mubr.f32.gmra.mrb[0].mxu0 %v1945
        %v2013 = vpop.f32.mrb[0].mxu0
        %v2014 = vadd.f32 %v1942, %v2013
        %v2015 = vpop.f32.mrb[0].mxu0
        %v2016 = vadd.f32 %v1942, %v2015
        %2017 = vdwg.mxu0
        %2018 = vmatprep.subr.mxu0 0.0
        %2019 = vmatpush1.msra.mxu0 %v1869
        %2020 = vmatprep.subr.mxu0 0.0
        %2021 = vmatpush1.msra.mxu0 %v1878
        %2022 = vmatprep.subr.mxu0 0.0
        %2023 = vmatpush1.msra.mxu0 %v1887
        %2024 = vmatprep.subr.mxu0 0.0
        %2025 = vmatpush1.msra.mxu0 %v1896
        %2026 = vmatprep.subr.mxu0 0.0
        %2027 = vmatpush1.msra.mxu0 %v1862
        %2028 = vmatprep.subr.mxu0 0.0
        %2029 = vmatpush1.msra.mxu0 %v1907
        %2030 = vmatprep.subr.mxu0 0.0
        %2031 = vmatpush1.msra.mxu0 %v1916
        %2032 = vmatprep.subr.mxu0 0.0
        %2033 = vmatpush1.msra.mxu0 %v1925
        %2034 = vmatprep.subr.mxu0 0.0
        %2035 = vmatpush1.msra.mxu0 %v1934
        %2036 = vmatprep.subr.mxu0 0.0
        %2037 = vmatpush1.msra.mxu0 0.0
        %2038 = vmatprep.subr.mxu0 0.0
        %2039 = vmatpush1.msra.mxu0 0.0
        %2040 = vmatprep.subr.mxu0 0.0
        %2041 = vmatpush1.msra.mxu0 0.0
        %2042 = vmatprep.subr.mxu0 0.0
        %2043 = vmatpush1.msra.mxu0 0.0
        %2044 = vmatprep.subr.mxu0 0.0
        %2045 = vmatpush1.msra.mxu0 0.0
        %2046 = vmatprep.subr.mxu0 0.0
        %2047 = vmatpush1.msra.mxu0 0.0
        %2048 = vmatprep.subr.mxu0 0.0
        %2049 = vmatpush1.msra.mxu0 0.0
        %2050 = vmatprep.subr.mxu0 0.0
        %2051 = vmatpush1.msra.mxu0 0.0
        %2052 = vmatprep.subr.mxu0 0.0
        %2053 = vmatpush1.msra.mxu0 0.0
        %2054 = vmatprep.subr.mxu0 0.0
        %2055 = vmatpush1.msra.mxu0 0.0
        %2056 = vmatprep.subr.mxu0 0.0
        %2057 = vmatpush1.msra.mxu0 0.0
        %2058 = vmatprep.subr.mxu0 0.0
        %2059 = vmatpush1.msra.mxu0 0.0
        %2060 = vmatprep.subr.mxu0 0.0
        %2061 = vmatpush1.msra.mxu0 0.0
        %2062 = vmatprep.subr.mxu0 0.0
        %2063 = vmatpush1.msra.mxu0 0.0
        %2064 = vmatprep.subr.mxu0 0.0
        %2065 = vmatpush1.msra.mxu0 0.0
        %2066 = vmatprep.subr.mxu0 0.0
        %2067 = vmatpush1.msra.mxu0 0.0
        %2068 = vmatprep.subr.mxu0 0.0
        %2069 = vmatpush1.msra.mxu0 0.0
        %2070 = vmatprep.subr.mxu0 0.0
        %2071 = vmatpush1.msra.mxu0 0.0
        %2072 = vmatprep.subr.mxu0 0.0
        %2073 = vmatpush1.msra.mxu0 0.0
        %2074 = vmatprep.subr.mxu0 0.0
        %2075 = vmatpush1.msra.mxu0 0.0
        %2076 = vmatprep.subr.mxu0 0.0
        %2077 = vmatpush1.msra.mxu0 0.0
        %2078 = vmatprep.subr.mxu0 0.0
        %2079 = vmatpush1.msra.mxu0 0.0
        %2080 = vmatprep.subr.mxu0 0.0
        %2081 = vmatpush1.msra.mxu0 0.0
        %2082 = vmatprep.mubr.f32.mxu0 0.0
        %2083 = vmatmul.mubr.f32.gmra.mrb[0].mxu0 %v1945
        %v2084 = vpop.f32.mrb[0].mxu0
        %v2085 = vadd.f32 %v1942, %v2084
        %v2086 = vpop.f32.mrb[0].mxu0
        %2087 = vdwg.mxu0
        %v2088 = vmax.f32 %v2014, 0.0
        %v2089 = vmax.f32 %v2016, 0.0
        %v2090 = vmax.f32 %v2085, 0.0
        %v2091 = vmul.f32 %v2088, %v219
        %v2092 = vmul.f32 %v2089, %v223
        %v2093 = vmul.f32 %v2090, %v227
        %2094 = vrot.lane.b32.xlu0 %v2091, 19
        %v2095 = vpop.permute.xlu0 %2094
        %2096 = vrot.lane.b32.xlu0 %v2092, 19
        %v2097 = vpop.permute.xlu0 %2096
        %2098 = vrot.lane.b32.xlu0 %v2093, 19
        %v2099 = vpop.permute.xlu0 %2098
        %v2100 = vsel %vm242, %v2097, %v2099
        %v2101 = vsel %vm242, %v2095, %v2097
        %v2102 = vsel %vm242, %v2099, %v2095
        %2103 = vrot.lane.b32.xlu0 %v2091, 18
        %v2104 = vpop.permute.xlu0 %2103
        %2105 = vrot.lane.b32.xlu0 %v2092, 18
        %v2106 = vpop.permute.xlu0 %2105
        %2107 = vrot.lane.b32.xlu0 %v2093, 18
        %v2108 = vpop.permute.xlu0 %2107
        %v2109 = vsel %vm252, %v2106, %v2108
        %v2110 = vsel %vm252, %v2104, %v2106
        %v2111 = vsel %vm252, %v2108, %v2104
        %2112 = vrot.lane.b32.xlu0 %v2091, 17
        %v2113 = vpop.permute.xlu0 %2112
        %2114 = vrot.lane.b32.xlu0 %v2092, 17
        %v2115 = vpop.permute.xlu0 %2114
        %2116 = vrot.lane.b32.xlu0 %v2093, 17
        %v2117 = vpop.permute.xlu0 %2116
        %v2118 = vsel %vm262, %v2115, %v2117
        %v2119 = vsel %vm262, %v2113, %v2115
        %v2120 = vsel %vm262, %v2117, %v2113
        %2121 = vrot.lane.b32.xlu0 %v2091, 1
        %v2122 = vpop.permute.xlu0 %2121
        %2123 = vrot.lane.b32.xlu0 %v2092, 1
        %v2124 = vpop.permute.xlu0 %2123
        %2125 = vrot.lane.b32.xlu0 %v2093, 1
        %v2126 = vpop.permute.xlu0 %2125
        %v2127 = vsel %vm272, %v2124, %v2126
        %v2128 = vsel %vm272, %v2122, %v2124
        %v2129 = vsel %vm272, %v2126, %v2122
        %2130 = vrot.lane.b32.xlu0 %v2091, 127
        %v2131 = vpop.permute.xlu0 %2130
        %2132 = vrot.lane.b32.xlu0 %v2092, 127
        %v2133 = vpop.permute.xlu0 %2132
        %2134 = vrot.lane.b32.xlu0 %v2093, 127
        %v2135 = vpop.permute.xlu0 %2134
        %v2136 = vsel %vm282, %v2133, %v2135
        %v2137 = vsel %vm282, %v2131, %v2133
        %v2138 = vsel %vm282, %v2135, %v2131
        %2139 = vrot.lane.b32.xlu0 %v2091, 111
        %v2140 = vpop.permute.xlu0 %2139
        %2141 = vrot.lane.b32.xlu0 %v2092, 111
        %v2142 = vpop.permute.xlu0 %2141
        %2143 = vrot.lane.b32.xlu0 %v2093, 111
        %v2144 = vpop.permute.xlu0 %2143
        %v2145 = vsel %vm292, %v2142, %v2144
        %v2146 = vsel %vm292, %v2140, %v2142
        %v2147 = vsel %vm292, %v2144, %v2140
        %2148 = vrot.lane.b32.xlu0 %v2091, 110
        %v2149 = vpop.permute.xlu0 %2148
        %2150 = vrot.lane.b32.xlu0 %v2092, 110
        %v2151 = vpop.permute.xlu0 %2150
        %2152 = vrot.lane.b32.xlu0 %v2093, 110
        %v2153 = vpop.permute.xlu0 %2152
        %v2154 = vsel %vm302, %v2151, %v2153
        %v2155 = vsel %vm302, %v2149, %v2151
        %v2156 = vsel %vm302, %v2153, %v2149
        %2157 = vrot.lane.b32.xlu0 %v2091, 109
        %v2158 = vpop.permute.xlu0 %2157
        %2159 = vrot.lane.b32.xlu0 %v2092, 109
        %v2160 = vpop.permute.xlu0 %2159
        %2161 = vrot.lane.b32.xlu0 %v2093, 109
        %v2162 = vpop.permute.xlu0 %2161
        %v2163 = vsel %vm312, %v2160, %v2162
        %v2164 = vsel %vm312, %v2158, %v2160
        %v2165 = vsel %vm312, %v2162, %v2158
        %s2166 = scalar_lea.vmem %s1, 64
        %v2167 = vld [vmem:[%s2166] sm:$0xff]
        %s2168 = scalar_lea.vmem %s2, 64
        %v2169 = vld [vmem:[%s2168] sm:$0xff]
        %2171 = vset.pattern.permute.xlu0 0
        %2172 = vperm.xlu0 %2171, %v2169
        %v2173 = vpop.permute.xlu0 %2172
        %v2176 = vsel %vm323, %v2167, 0
        %2178 = vmatprep.subr.mxu0 %v2101
        %2179 = vmatpush1.msra.mxu0 %v2102
        %2180 = vmatprep.subr.mxu0 %v2110
        %2181 = vmatpush1.msra.mxu0 %v2111
        %2182 = vmatprep.subr.mxu0 %v2119
        %2183 = vmatpush1.msra.mxu0 %v2120
        %2184 = vmatprep.subr.mxu0 %v2128
        %2185 = vmatpush1.msra.mxu0 %v2129
        %2186 = vmatprep.subr.mxu0 %v2092
        %2187 = vmatpush1.msra.mxu0 %v2091
        %2188 = vmatprep.subr.mxu0 %v2136
        %2189 = vmatpush1.msra.mxu0 %v2137
        %2190 = vmatprep.subr.mxu0 %v2145
        %2191 = vmatpush1.msra.mxu0 %v2146
        %2192 = vmatprep.subr.mxu0 %v2154
        %2193 = vmatpush1.msra.mxu0 %v2155
        %2194 = vmatprep.subr.mxu0 %v2163
        %2195 = vmatpush1.msra.mxu0 %v2164
        %2196 = vmatprep.subr.mxu0 0.0
        %2197 = vmatpush1.msra.mxu0 0.0
        %2198 = vmatprep.subr.mxu0 0.0
        %2199 = vmatpush1.msra.mxu0 0.0
        %2200 = vmatprep.subr.mxu0 0.0
        %2201 = vmatpush1.msra.mxu0 0.0
        %2202 = vmatprep.subr.mxu0 0.0
        %2203 = vmatpush1.msra.mxu0 0.0
        %2204 = vmatprep.subr.mxu0 0.0
        %2205 = vmatpush1.msra.mxu0 0.0
        %2206 = vmatprep.subr.mxu0 0.0
        %2207 = vmatpush1.msra.mxu0 0.0
        %2208 = vmatprep.subr.mxu0 0.0
        %2209 = vmatpush1.msra.mxu0 0.0
        %2210 = vmatprep.subr.mxu0 0.0
        %2211 = vmatpush1.msra.mxu0 0.0
        %2212 = vmatprep.subr.mxu0 0.0
        %2213 = vmatpush1.msra.mxu0 0.0
        %2214 = vmatprep.subr.mxu0 0.0
        %2215 = vmatpush1.msra.mxu0 0.0
        %2216 = vmatprep.subr.mxu0 0.0
        %2217 = vmatpush1.msra.mxu0 0.0
        %2218 = vmatprep.subr.mxu0 0.0
        %2219 = vmatpush1.msra.mxu0 0.0
        %2220 = vmatprep.subr.mxu0 0.0
        %2221 = vmatpush1.msra.mxu0 0.0
        %2222 = vmatprep.subr.mxu0 0.0
        %2223 = vmatpush1.msra.mxu0 0.0
        %2224 = vmatprep.subr.mxu0 0.0
        %2225 = vmatpush1.msra.mxu0 0.0
        %2226 = vmatprep.subr.mxu0 0.0
        %2227 = vmatpush1.msra.mxu0 0.0
        %2228 = vmatprep.subr.mxu0 0.0
        %2229 = vmatpush1.msra.mxu0 0.0
        %2230 = vmatprep.subr.mxu0 0.0
        %2231 = vmatpush1.msra.mxu0 0.0
        %2232 = vmatprep.subr.mxu0 0.0
        %2233 = vmatpush1.msra.mxu0 0.0
        %2234 = vmatprep.subr.mxu0 0.0
        %2235 = vmatpush1.msra.mxu0 0.0
        %2236 = vmatprep.subr.mxu0 0.0
        %2237 = vmatpush1.msra.mxu0 0.0
        %2238 = vmatprep.subr.mxu0 0.0
        %2239 = vmatpush1.msra.mxu0 0.0
        %2240 = vmatprep.subr.mxu0 0.0
        %2241 = vmatpush1.msra.mxu0 0.0
        %2242 = vmatprep.mubr.f32.mxu0 0.0
        %2243 = vmatmul.mubr.f32.gmra.mrb[0].mxu0 %v2176
        %v2244 = vpop.f32.mrb[0].mxu0
        %v2245 = vadd.f32 %v2173, %v2244
        %v2246 = vpop.f32.mrb[0].mxu0
        %v2247 = vadd.f32 %v2173, %v2246
        %2248 = vdwg.mxu0
        %2249 = vmatprep.subr.mxu0 0.0
        %2250 = vmatpush1.msra.mxu0 %v2100
        %2251 = vmatprep.subr.mxu0 0.0
        %2252 = vmatpush1.msra.mxu0 %v2109
        %2253 = vmatprep.subr.mxu0 0.0
        %2254 = vmatpush1.msra.mxu0 %v2118
        %2255 = vmatprep.subr.mxu0 0.0
        %2256 = vmatpush1.msra.mxu0 %v2127
        %2257 = vmatprep.subr.mxu0 0.0
        %2258 = vmatpush1.msra.mxu0 %v2093
        %2259 = vmatprep.subr.mxu0 0.0
        %2260 = vmatpush1.msra.mxu0 %v2138
        %2261 = vmatprep.subr.mxu0 0.0
        %2262 = vmatpush1.msra.mxu0 %v2147
        %2263 = vmatprep.subr.mxu0 0.0
        %2264 = vmatpush1.msra.mxu0 %v2156
        %2265 = vmatprep.subr.mxu0 0.0
        %2266 = vmatpush1.msra.mxu0 %v2165
        %2267 = vmatprep.subr.mxu0 0.0
        %2268 = vmatpush1.msra.mxu0 0.0
        %2269 = vmatprep.subr.mxu0 0.0
        %2270 = vmatpush1.msra.mxu0 0.0
        %2271 = vmatprep.subr.mxu0 0.0
        %2272 = vmatpush1.msra.mxu0 0.0
        %2273 = vmatprep.subr.mxu0 0.0
        %2274 = vmatpush1.msra.mxu0 0.0
        %2275 = vmatprep.subr.mxu0 0.0
        %2276 = vmatpush1.msra.mxu0 0.0
        %2277 = vmatprep.subr.mxu0 0.0
        %2278 = vmatpush1.msra.mxu0 0.0
        %2279 = vmatprep.subr.mxu0 0.0
        %2280 = vmatpush1.msra.mxu0 0.0
        %2281 = vmatprep.subr.mxu0 0.0
        %2282 = vmatpush1.msra.mxu0 0.0
        %2283 = vmatprep.subr.mxu0 0.0
        %2284 = vmatpush1.msra.mxu0 0.0
        %2285 = vmatprep.subr.mxu0 0.0
        %2286 = vmatpush1.msra.mxu0 0.0
        %2287 = vmatprep.subr.mxu0 0.0
        %2288 = vmatpush1.msra.mxu0 0.0
        %2289 = vmatprep.subr.mxu0 0.0
        %2290 = vmatpush1.msra.mxu0 0.0
        %2291 = vmatprep.subr.mxu0 0.0
        %2292 = vmatpush1.msra.mxu0 0.0
        %2293 = vmatprep.subr.mxu0 0.0
        %2294 = vmatpush1.msra.mxu0 0.0
        %2295 = vmatprep.subr.mxu0 0.0
        %2296 = vmatpush1.msra.mxu0 0.0
        %2297 = vmatprep.subr.mxu0 0.0
        %2298 = vmatpush1.msra.mxu0 0.0
        %2299 = vmatprep.subr.mxu0 0.0
        %2300 = vmatpush1.msra.mxu0 0.0
        %2301 = vmatprep.subr.mxu0 0.0
        %2302 = vmatpush1.msra.mxu0 0.0
        %2303 = vmatprep.subr.mxu0 0.0
        %2304 = vmatpush1.msra.mxu0 0.0
        %2305 = vmatprep.subr.mxu0 0.0
        %2306 = vmatpush1.msra.mxu0 0.0
        %2307 = vmatprep.subr.mxu0 0.0
        %2308 = vmatpush1.msra.mxu0 0.0
        %2309 = vmatprep.subr.mxu0 0.0
        %2310 = vmatpush1.msra.mxu0 0.0
        %2311 = vmatprep.subr.mxu0 0.0
        %2312 = vmatpush1.msra.mxu0 0.0
        %2313 = vmatprep.mubr.f32.mxu0 0.0
        %2314 = vmatmul.mubr.f32.gmra.mrb[0].mxu0 %v2176
        %v2315 = vpop.f32.mrb[0].mxu0
        %v2316 = vadd.f32 %v2173, %v2315
        %v2317 = vpop.f32.mrb[0].mxu0
        %2318 = vdwg.mxu0
        %v2319 = vmax.f32 %v2245, 0.0
        %v2320 = vmax.f32 %v2247, 0.0
        %v2321 = vmax.f32 %v2316, 0.0
        %v2322 = vmul.f32 %v2319, %v219
        %v2323 = vmul.f32 %v2320, %v223
        %v2324 = vmul.f32 %v2321, %v227
        %v2325 = vadd.f32 %v2322, %v1629
        %v2326 = vadd.f32 %v2323, %v1630
        %v2327 = vadd.f32 %v2324, %v1631
        %2328 = vst [vmem:[%s213] sm:$0xff] %v2325
        %2329 = vst [vmem:[%s213 + $0x8] sm:$0xff] %v2326
        %2330 = vst [vmem:[%s213 + $0x10] sm:$0xff] %v2327
        %s2331 = sand.u32 %s118, 1
        %s2332 = scalar_lea.sflag [#allocation4], %s2331
        %s2333 = sand.u32 %s118, 1
        %s2334 = smul.addr %s2333, 24
        %s2335 = scalar_lea.vmem [#allocation5], %s2334
        // Predicated region
        $region41: #{tpu_custom_call.1} parent=35 // pred_check
          %p2336 = pneg %p128
        $region42: #{tpu_custom_call.1} parent=35 // pred_check_branch
          %2338 = sbr.rel (%p2336) target = $region44
        $region43: #{tpu_custom_call.1} parent=35 // pred_region
          %s2340 = ssub.s32 384, 384
          %2341 = vsyncadd %s2332, %s2340
          %s2342 = smul.addr %s21, 3
          %s2343 = smul.addr %s2342, 128
          %s2344 = scalar_lea.hbm %s4, %s2343
          %s2346 = sshll.u32 %s2335, 4
          %s2347 = int_to_ptr.vmem [resolvable:$true] %s2346
          %2349 = dma.vmem_to_hbm [thread:$0]  %s2347, 384, %s2344, %s2332
        $region44: #{tpu_custom_call.1} parent=35 // pred_fallthru
          _
      $region36: #{tpu_custom_call.1} parent=5 // pred_fallthru
        _
      %p2350 = scmp.le.s32.totalorder 2, %s16
      // Predicated region
      $region45: #{tpu_custom_call.1} parent=5 // pred_check
        %p2351 = pneg %p2350
      $region46: #{tpu_custom_call.1} parent=5 // pred_check_branch
        %2353 = sbr.rel (%p2351) target = $region48
      $region47: #{tpu_custom_call.1} parent=5 // pred_region
        %s2354 = ssub.s32 %s16, 2
        // Predicated region
        $region49: #{tpu_custom_call.1} parent=47 // pred_check
          %p2355 = pneg %p134
        $region50: #{tpu_custom_call.1} parent=47 // pred_check_branch
          %2357 = sbr.rel (%p2355) target = $region52
        $region51: #{tpu_custom_call.1} parent=47 // pred_region
          %s2358 = sand.u32 %s119, 1
          %s2359 = scalar_lea.sflag [#allocation4], %s2358
          %s2360 = sand.u32 %s119, 1
          %s2361 = smul.addr %s2360, 24
          %s2362 = scalar_lea.vmem [#allocation5], %s2361
          %2363 = dma.done %s2359, 384
        $region52: #{tpu_custom_call.1} parent=47 // pred_fallthru
          _
      $region48: #{tpu_custom_call.1} parent=5 // pred_fallthru
        _
    $region6: #{tpu_custom_call.1} parent=1 // loop_footer
      %s20 = sadd.s32 1, %s16
    $region7: #{tpu_custom_call.1} parent=1 // loop_footer_branch
      %15 = sbr.rel target = $region3
    $region8: #{tpu_custom_call.1} parent=1 // loop_exit
      _
    %2364 = vsyncpa [#allocation3], 1
    %s2365 = scalar_lea.sflag [#allocation3], 1
    %2366 = vsyncpa %s2365, 1
    %2367 = vsyncpa [#allocation4], 1
    %s2368 = scalar_lea.sflag [#allocation4], 1
    %2369 = vsyncpa %s2368, 1

</llo_original>
